<compile_context>
chip_gen: v6e
topology: v6e:2x2x1
jax: 0.10.0
libtpu: 0.0.40
codegen_flags: <defaults>
</compile_context>

<pallas_src>
import functools
import math

import numpy as np
import jax
import jax.numpy as jnp
from jax.experimental import pallas as pl
from jax.experimental.pallas import tpu as pltpu

EPS = 1e-5            # PyTorch nn.LayerNorm default
_SUBLANE = 8
_LANE = 128


def _round_up(a, b):
    return (a + b - 1) // b * b


def _merge_kernel(xp_ref, w_ref, b_ref, g_ref, bt_ref, o_ref, *, ho, wo):
    # xp_ref: (4, Pr, C1p)   bf16 parity planes of one padded image
    # w_ref : (9, C1p, C2)   bf16 conv weight, tap-major (kh*3+kw)
    # b_ref / g_ref / bt_ref: (1, C2) f32
    # o_ref : (1, Ho, Wo, C2)
    wq = wo + 1                      # parity-plane row length (incl. phantom col)
    mq = ho * wq                     # matmul M (phantom column rows are harmless)
    c2 = w_ref.shape[-1]

    acc = jnp.zeros((mq, c2), jnp.float32)
    for kh in range(3):
        for kw in range(3):
            p = (kh % 2) * 2 + (kw % 2)               # parity plane index
            off = (kh // 2) * wq + (kw // 2)          # unit-stride window offset
            piece = xp_ref[p, off:off + mq, :]        # (mq, C1p) bf16, contiguous
            acc = acc + jnp.dot(piece, w_ref[kh * 3 + kw],
                                preferred_element_type=jnp.float32)

    y = acc + b_ref[...]                              # conv bias, f32
    # LayerNorm(C2): no padded channels -> no masking needed.
    mean = jnp.mean(y, axis=-1, keepdims=True)
    cen = y - mean
    var = jnp.mean(cen * cen, axis=-1, keepdims=True)
    out = cen * jax.lax.rsqrt(var + EPS) * g_ref[...] + bt_ref[...]
    out = out.astype(o_ref.dtype)

    # Drop the phantom column with Ho plain (unrolled) row stores.
    for r in range(ho):
        o_ref[0, r, :, :] = out[r * wq:r * wq + wo, :]


def _vmem_limit_bytes(need_bytes):
    """Generation-aware VMEM limit: plenty of room, explicit Mosaic headroom."""
    try:
        cap = int(pltpu.get_tpu_info().vmem_capacity_bytes)
    except Exception:                 # pragma: no cover - conservative fallback
        cap = 64 * 1024 * 1024        # v7x per-TensorCore size
    headroom = 8 * 1024 * 1024
    want = max(4 * int(need_bytes), 32 * 1024 * 1024)
    return int(max(min(want, cap - headroom), 16 * 1024 * 1024))


def _merge_block_impl(x, w_hwio, b_conv, gamma, beta):
    """x: (B, N, C1), N = H*W, H == W. Returns (B, (H//2)*(W//2), C2)."""
    B, N, C1 = x.shape
    H = W = math.isqrt(N)
    assert H * W == N, "sequence length must be a perfect square"
    C2 = w_hwio.shape[-1]
    Ho, Wo = H // 2, W // 2                    # conv 3x3, stride 2, pad 1
    Hq, Wq = Ho + 1, Wo + 1                    # parity-plane extents

    C1p = _round_up(C1, _SUBLANE)              # sublane-only pad (no 128 pad)
    Pr = _round_up(Hq * Wq + 1, _SUBLANE)      # +1 covers last phantom-col tap

    # ---- glue: parity-split padded NHWC image (bf16, ~1.06x input in HBM) ----
    x_img = x.reshape(B, H, W, C1).astype(jnp.bfloat16)
    x_pad = jnp.pad(x_img, ((0, 0), (1, 1), (1, 1), (0, 0)))
    xp = x_pad.reshape(B, Hq, 2, Wq, 2, C1).transpose(0, 2, 4, 1, 3, 5)
    xp = xp.reshape(B, 4, Hq * Wq, C1)
    xp = jnp.pad(xp, ((0, 0), (0, 0), (0, Pr - Hq * Wq), (0, C1p - C1)))
    xp = xp.reshape(B * 4, Pr, C1p)

    w9 = jnp.pad(w_hwio.reshape(9, C1, C2), ((0, 0), (0, C1p - C1), (0, 0)))
    w9 = w9.astype(jnp.bfloat16)
    b2 = b_conv.reshape(1, C2).astype(jnp.float32)
    g2 = gamma.reshape(1, C2).astype(jnp.float32)
    bt2 = beta.reshape(1, C2).astype(jnp.float32)

    out_dtype = x.dtype
    out_isz = jnp.dtype(out_dtype).itemsize

    # Rough per-step VMEM working set (double-buffered input/output/weights
    # plus the f32 accumulator) for the generation-aware limit.
    in_blk = 4 * _round_up(Pr, 16) * max(C1p, _LANE) * 2
    out_blk = Ho * _round_up(Wo, _SUBLANE) * max(_round_up(C2, _LANE), _LANE) * out_isz
    w_blk = 9 * max(_round_up(C1p, 16), 16) * max(_round_up(C2, _LANE), _LANE) * 2
    acc_blk = Ho * Wq * max(_round_up(C2, _LANE), _LANE) * 4
    need = 2 * (in_blk + out_blk + w_blk) + acc_blk

    cost = pl.CostEstimate(
        flops=2 * B * Ho * Wo * 9 * C1 * C2,
        transcendentals=B * Ho * Wo,
        bytes_accessed=int(xp.size) * 2 + int(w9.size) * 2
        + (int(b2.size) + int(g2.size) + int(bt2.size)) * 4
        + B * Ho * Wo * C2 * out_isz)

    out = pl.pallas_call(
        functools.partial(_merge_kernel, ho=Ho, wo=Wo),
        out_shape=jax.ShapeDtypeStruct((B, Ho, Wo, C2), out_dtype),
        grid=(B,),
        in_specs=[
            pl.BlockSpec((4, Pr, C1p), lambda b: (b, 0, 0)),      # parity planes
            pl.BlockSpec((9, C1p, C2), lambda b: (0, 0, 0)),      # conv weight
            pl.BlockSpec((1, C2), lambda b: (0, 0)),              # conv bias
            pl.BlockSpec((1, C2), lambda b: (0, 0)),              # LN gamma
            pl.BlockSpec((1, C2), lambda b: (0, 0)),              # LN beta
        ],
        out_specs=pl.BlockSpec((1, Ho, Wo, C2), lambda b: (b, 0, 0, 0)),
        compiler_params=pltpu.CompilerParams(
            dimension_semantics=("parallel",),                    # megacore over B
            vmem_limit_bytes=_vmem_limit_bytes(need)),
        cost_estimate=cost,
    )(xp, w9, b2, g2, bt2)

    # Layout-preserving (free) reshape; no slicing copy needed.
    return out.reshape(B, Ho * Wo, C2)


# jit glue + pallas_call together so the pad / parity transpose producing xp is
# a single fused XLA op feeding the custom call.
merge_block_pallas = jax.jit(_merge_block_impl)


def merge_block_ref(x, w_hwio, b_conv, gamma, beta):
    """Pure-JAX reference (conv + layernorm) for correctness checking."""
    B, N, C1 = x.shape
    H = W = math.isqrt(N)
    C2 = w_hwio.shape[-1]
    x_img = x.reshape(B, H, W, C1)
    y = jax.lax.conv_general_dilated(
        x_img, w_hwio, window_strides=(2, 2), padding=((1, 1), (1, 1)),
        dimension_numbers=("NHWC", "HWIO", "NHWC"))
    y = y + b_conv.reshape(1, 1, 1, C2)
    y = y.reshape(B, -1, C2)
    mean = jnp.mean(y, axis=-1, keepdims=True)
    var = jnp.mean((y - mean) ** 2, axis=-1, keepdims=True)
    return (y - mean) / jnp.sqrt(var + EPS) * gamma + beta


if __name__ == "__main__":
    # Small shapes consistent with the module: B=2, C1=4, C2=8, H=W=16.
    B, C1, C2, H = 2, 4, 8, 16
    N = H * H

    key = jax.random.PRNGKey(0)
    kx, kw, kb, kg, kbt = jax.random.split(key, 5)

    x = jax.random.normal(kx, (B, N, C1), dtype=jnp.float32)
    # Conv weight in HWIO (3, 3, C1, C2); PyTorch's OIHW weight would be
    # w_oihw.transpose(2, 3, 1, 0).
    w_hwio = jax.random.normal(kw, (3, 3, C1, C2), dtype=jnp.float32) * 0.1
    b_conv = jax.random.normal(kb, (C2,), dtype=jnp.float32) * 0.1
    gamma = 1.0 + 0.1 * jax.random.normal(kg, (C2,), dtype=jnp.float32)
    beta = 0.1 * jax.random.normal(kbt, (C2,), dtype=jnp.float32)

    out = merge_block_pallas(x, w_hwio, b_conv, gamma, beta)
    out = jax.block_until_ready(out)
    assert out.shape == (B, (H // 2) * (H // 2), C2)

    # Reference with the same bf16 rounding of the MXU operands (accumulation
    # and LayerNorm are f32 in both paths).
    x_q = x.astype(jnp.bfloat16).astype(jnp.float32)
    w_q = w_hwio.astype(jnp.bfloat16).astype(jnp.float32)
    ref = merge_block_ref(x_q, w_q, b_conv, gamma, beta)
    np.testing.assert_allclose(np.asarray(out), np.asarray(ref),
                               rtol=1e-2, atol=1e-2)
    print("KERNEL_OK")
</pallas_src>

<mosaic_0001>
module attributes {stable_mosaic.version = 11 : i64} {
  func.func @_merge_kernel(%arg0: i32, %arg1: memref<4x88x8xbf16, #tpu.memory_space<vmem>>, %arg2: memref<9x8x8xbf16, #tpu.memory_space<vmem>>, %arg3: memref<1x8xf32, #tpu.memory_space<vmem>>, %arg4: memref<1x8xf32, #tpu.memory_space<vmem>>, %arg5: memref<1x8xf32, #tpu.memory_space<vmem>>, %arg6: memref<1x8x8x8xf32, #tpu.memory_space<vmem>>) attributes {dimension_semantics = [#tpu.dimension_semantics<parallel>], iteration_bounds = array<i64: 2>, scalar_prefetch = 0 : i64, scratch_operands = 0 : i64, tpu.core_type = #tpu.core_type<tc>, window_params = [{transform_indices = @transform_0, window_bounds = array<i64: 4, 88, 8>}, {pipeline_mode = #tpu.pipeline_mode<synchronous>, transform_indices = @transform_1, window_bounds = array<i64: 9, 8, 8>}, {pipeline_mode = #tpu.pipeline_mode<synchronous>, transform_indices = @transform_2, window_bounds = array<i64: 1, 8>}, {pipeline_mode = #tpu.pipeline_mode<synchronous>, transform_indices = @transform_3, window_bounds = array<i64: 1, 8>}, {pipeline_mode = #tpu.pipeline_mode<synchronous>, transform_indices = @transform_4, window_bounds = array<i64: 1, 8>}, {transform_indices = @transform_5, window_bounds = array<i64: 1, 8, 8, 8>}]} {
    %cst = arith.constant 0.000000e+00 : f32
    %0 = vector.broadcast %cst : f32 to vector<72x8xf32>
    %c0 = arith.constant 0 : index
    %c0_0 = arith.constant 0 : index
    %c0_1 = arith.constant 0 : index
    %1 = vector.load %arg1[%c0, %c0_0, %c0_1] : memref<4x88x8xbf16, #tpu.memory_space<vmem>>, vector<1x72x8xbf16>
    %2 = vector.shape_cast %1 : vector<1x72x8xbf16> to vector<72x8xbf16>
    %c0_2 = arith.constant 0 : index
    %c0_3 = arith.constant 0 : index
    %c0_4 = arith.constant 0 : index
    %3 = vector.load %arg2[%c0_2, %c0_3, %c0_4] : memref<9x8x8xbf16, #tpu.memory_space<vmem>>, vector<1x8x8xbf16>
    %4 = vector.shape_cast %3 : vector<1x8x8xbf16> to vector<8x8xbf16>
    %cst_5 = arith.constant dense<0.000000e+00> : vector<72x8xf32>
    %5 = tpu.matmul %2, %4, %cst_5 {dimension_numbers = #tpu.dot_dimension_numbers<[1], [0], [0], [1], [0, 0, 1, 1], [], []>} : vector<72x8xbf16>, vector<8x8xbf16>, vector<72x8xf32> -> vector<72x8xf32>
    %6 = arith.addf %0, %5 : vector<72x8xf32>
    %c1 = arith.constant 1 : index
    %c0_6 = arith.constant 0 : index
    %c0_7 = arith.constant 0 : index
    %7 = vector.load %arg1[%c1, %c0_6, %c0_7] : memref<4x88x8xbf16, #tpu.memory_space<vmem>>, vector<1x72x8xbf16>
    %8 = vector.shape_cast %7 : vector<1x72x8xbf16> to vector<72x8xbf16>
    %c1_8 = arith.constant 1 : index
    %c0_9 = arith.constant 0 : index
    %c0_10 = arith.constant 0 : index
    %9 = vector.load %arg2[%c1_8, %c0_9, %c0_10] : memref<9x8x8xbf16, #tpu.memory_space<vmem>>, vector<1x8x8xbf16>
    %10 = vector.shape_cast %9 : vector<1x8x8xbf16> to vector<8x8xbf16>
    %cst_11 = arith.constant dense<0.000000e+00> : vector<72x8xf32>
    %11 = tpu.matmul %8, %10, %cst_11 {dimension_numbers = #tpu.dot_dimension_numbers<[1], [0], [0], [1], [0, 0, 1, 1], [], []>} : vector<72x8xbf16>, vector<8x8xbf16>, vector<72x8xf32> -> vector<72x8xf32>
    %12 = arith.addf %6, %11 : vector<72x8xf32>
    %c0_12 = arith.constant 0 : index
    %c1_13 = arith.constant 1 : index
    %c0_14 = arith.constant 0 : index
    %13 = vector.load %arg1[%c0_12, %c1_13, %c0_14] : memref<4x88x8xbf16, #tpu.memory_space<vmem>>, vector<1x72x8xbf16>
    %14 = vector.shape_cast %13 : vector<1x72x8xbf16> to vector<72x8xbf16>
    %c2 = arith.constant 2 : index
    %c0_15 = arith.constant 0 : index
    %c0_16 = arith.constant 0 : index
    %15 = vector.load %arg2[%c2, %c0_15, %c0_16] : memref<9x8x8xbf16, #tpu.memory_space<vmem>>, vector<1x8x8xbf16>
    %16 = vector.shape_cast %15 : vector<1x8x8xbf16> to vector<8x8xbf16>
    %cst_17 = arith.constant dense<0.000000e+00> : vector<72x8xf32>
    %17 = tpu.matmul %14, %16, %cst_17 {dimension_numbers = #tpu.dot_dimension_numbers<[1], [0], [0], [1], [0, 0, 1, 1], [], []>} : vector<72x8xbf16>, vector<8x8xbf16>, vector<72x8xf32> -> vector<72x8xf32>
    %18 = arith.addf %12, %17 : vector<72x8xf32>
    %c2_18 = arith.constant 2 : index
    %c0_19 = arith.constant 0 : index
    %c0_20 = arith.constant 0 : index
    %19 = vector.load %arg1[%c2_18, %c0_19, %c0_20] : memref<4x88x8xbf16, #tpu.memory_space<vmem>>, vector<1x72x8xbf16>
    %20 = vector.shape_cast %19 : vector<1x72x8xbf16> to vector<72x8xbf16>
    %c3 = arith.constant 3 : index
    %c0_21 = arith.constant 0 : index
    %c0_22 = arith.constant 0 : index
    %21 = vector.load %arg2[%c3, %c0_21, %c0_22] : memref<9x8x8xbf16, #tpu.memory_space<vmem>>, vector<1x8x8xbf16>
    %22 = vector.shape_cast %21 : vector<1x8x8xbf16> to vector<8x8xbf16>
    %cst_23 = arith.constant dense<0.000000e+00> : vector<72x8xf32>
    %23 = tpu.matmul %20, %22, %cst_23 {dimension_numbers = #tpu.dot_dimension_numbers<[1], [0], [0], [1], [0, 0, 1, 1], [], []>} : vector<72x8xbf16>, vector<8x8xbf16>, vector<72x8xf32> -> vector<72x8xf32>
    %24 = arith.addf %18, %23 : vector<72x8xf32>
    %c3_24 = arith.constant 3 : index
    %c0_25 = arith.constant 0 : index
    %c0_26 = arith.constant 0 : index
    %25 = vector.load %arg1[%c3_24, %c0_25, %c0_26] : memref<4x88x8xbf16, #tpu.memory_space<vmem>>, vector<1x72x8xbf16>
    %26 = vector.shape_cast %25 : vector<1x72x8xbf16> to vector<72x8xbf16>
    %c4 = arith.constant 4 : index
    %c0_27 = arith.constant 0 : index
    %c0_28 = arith.constant 0 : index
    %27 = vector.load %arg2[%c4, %c0_27, %c0_28] : memref<9x8x8xbf16, #tpu.memory_space<vmem>>, vector<1x8x8xbf16>
    %28 = vector.shape_cast %27 : vector<1x8x8xbf16> to vector<8x8xbf16>
    %cst_29 = arith.constant dense<0.000000e+00> : vector<72x8xf32>
    %29 = tpu.matmul %26, %28, %cst_29 {dimension_numbers = #tpu.dot_dimension_numbers<[1], [0], [0], [1], [0, 0, 1, 1], [], []>} : vector<72x8xbf16>, vector<8x8xbf16>, vector<72x8xf32> -> vector<72x8xf32>
    %30 = arith.addf %24, %29 : vector<72x8xf32>
    %c2_30 = arith.constant 2 : index
    %c1_31 = arith.constant 1 : index
    %c0_32 = arith.constant 0 : index
    %31 = vector.load %arg1[%c2_30, %c1_31, %c0_32] : memref<4x88x8xbf16, #tpu.memory_space<vmem>>, vector<1x72x8xbf16>
    %32 = vector.shape_cast %31 : vector<1x72x8xbf16> to vector<72x8xbf16>
    %c5 = arith.constant 5 : index
    %c0_33 = arith.constant 0 : index
    %c0_34 = arith.constant 0 : index
    %33 = vector.load %arg2[%c5, %c0_33, %c0_34] : memref<9x8x8xbf16, #tpu.memory_space<vmem>>, vector<1x8x8xbf16>
    %34 = vector.shape_cast %33 : vector<1x8x8xbf16> to vector<8x8xbf16>
    %cst_35 = arith.constant dense<0.000000e+00> : vector<72x8xf32>
    %35 = tpu.matmul %32, %34, %cst_35 {dimension_numbers = #tpu.dot_dimension_numbers<[1], [0], [0], [1], [0, 0, 1, 1], [], []>} : vector<72x8xbf16>, vector<8x8xbf16>, vector<72x8xf32> -> vector<72x8xf32>
    %36 = arith.addf %30, %35 : vector<72x8xf32>
    %c0_36 = arith.constant 0 : index
    %c9 = arith.constant 9 : index
    %c0_37 = arith.constant 0 : index
    %37 = vector.load %arg1[%c0_36, %c9, %c0_37] : memref<4x88x8xbf16, #tpu.memory_space<vmem>>, vector<1x72x8xbf16>
    %38 = vector.shape_cast %37 : vector<1x72x8xbf16> to vector<72x8xbf16>
    %c6 = arith.constant 6 : index
    %c0_38 = arith.constant 0 : index
    %c0_39 = arith.constant 0 : index
    %39 = vector.load %arg2[%c6, %c0_38, %c0_39] : memref<9x8x8xbf16, #tpu.memory_space<vmem>>, vector<1x8x8xbf16>
    %40 = vector.shape_cast %39 : vector<1x8x8xbf16> to vector<8x8xbf16>
    %cst_40 = arith.constant dense<0.000000e+00> : vector<72x8xf32>
    %41 = tpu.matmul %38, %40, %cst_40 {dimension_numbers = #tpu.dot_dimension_numbers<[1], [0], [0], [1], [0, 0, 1, 1], [], []>} : vector<72x8xbf16>, vector<8x8xbf16>, vector<72x8xf32> -> vector<72x8xf32>
    %42 = arith.addf %36, %41 : vector<72x8xf32>
    %c1_41 = arith.constant 1 : index
    %c9_42 = arith.constant 9 : index
    %c0_43 = arith.constant 0 : index
    %43 = vector.load %arg1[%c1_41, %c9_42, %c0_43] : memref<4x88x8xbf16, #tpu.memory_space<vmem>>, vector<1x72x8xbf16>
    %44 = vector.shape_cast %43 : vector<1x72x8xbf16> to vector<72x8xbf16>
    %c7 = arith.constant 7 : index
    %c0_44 = arith.constant 0 : index
    %c0_45 = arith.constant 0 : index
    %45 = vector.load %arg2[%c7, %c0_44, %c0_45] : memref<9x8x8xbf16, #tpu.memory_space<vmem>>, vector<1x8x8xbf16>
    %46 = vector.shape_cast %45 : vector<1x8x8xbf16> to vector<8x8xbf16>
    %cst_46 = arith.constant dense<0.000000e+00> : vector<72x8xf32>
    %47 = tpu.matmul %44, %46, %cst_46 {dimension_numbers = #tpu.dot_dimension_numbers<[1], [0], [0], [1], [0, 0, 1, 1], [], []>} : vector<72x8xbf16>, vector<8x8xbf16>, vector<72x8xf32> -> vector<72x8xf32>
    %48 = arith.addf %42, %47 : vector<72x8xf32>
    %c0_47 = arith.constant 0 : index
    %c10 = arith.constant 10 : index
    %c0_48 = arith.constant 0 : index
    %49 = vector.load %arg1[%c0_47, %c10, %c0_48] : memref<4x88x8xbf16, #tpu.memory_space<vmem>>, vector<1x72x8xbf16>
    %50 = vector.shape_cast %49 : vector<1x72x8xbf16> to vector<72x8xbf16>
    %c8 = arith.constant 8 : index
    %c0_49 = arith.constant 0 : index
    %c0_50 = arith.constant 0 : index
    %51 = vector.load %arg2[%c8, %c0_49, %c0_50] : memref<9x8x8xbf16, #tpu.memory_space<vmem>>, vector<1x8x8xbf16>
    %52 = vector.shape_cast %51 : vector<1x8x8xbf16> to vector<8x8xbf16>
    %cst_51 = arith.constant dense<0.000000e+00> : vector<72x8xf32>
    %53 = tpu.matmul %50, %52, %cst_51 {dimension_numbers = #tpu.dot_dimension_numbers<[1], [0], [0], [1], [0, 0, 1, 1], [], []>} : vector<72x8xbf16>, vector<8x8xbf16>, vector<72x8xf32> -> vector<72x8xf32>
    %54 = arith.addf %48, %53 : vector<72x8xf32>
    %c0_52 = arith.constant 0 : index
    %c0_53 = arith.constant 0 : index
    %55 = vector.load %arg3[%c0_52, %c0_53] : memref<1x8xf32, #tpu.memory_space<vmem>>, vector<1x8xf32>
    %56 = vector.broadcast %55 : vector<1x8xf32> to vector<72x8xf32>
    %57 = arith.addf %54, %56 : vector<72x8xf32>
    %cst_54 = arith.constant dense<0.000000e+00> : vector<72xf32>
    %58 = vector.multi_reduction <add>, %57, %cst_54 [1] : vector<72x8xf32> to vector<72xf32>
    %59 = vector.shape_cast %58 : vector<72xf32> to vector<72x1xf32>
    %cst_55 = arith.constant 8.000000e+00 : f32
    %60 = vector.broadcast %cst_55 : f32 to vector<72x1xf32>
    %61 = arith.divf %59, %60 : vector<72x1xf32>
    %62 = vector.broadcast %61 : vector<72x1xf32> to vector<72x8xf32>
    %63 = arith.subf %57, %62 : vector<72x8xf32>
    %64 = arith.mulf %63, %63 : vector<72x8xf32>
    %cst_56 = arith.constant dense<0.000000e+00> : vector<72xf32>
    %65 = vector.multi_reduction <add>, %64, %cst_56 [1] : vector<72x8xf32> to vector<72xf32>
    %66 = vector.shape_cast %65 : vector<72xf32> to vector<72x1xf32>
    %cst_57 = arith.constant 8.000000e+00 : f32
    %67 = vector.broadcast %cst_57 : f32 to vector<72x1xf32>
    %68 = arith.divf %66, %67 : vector<72x1xf32>
    %cst_58 = arith.constant 9.99999974E-6 : f32
    %69 = vector.broadcast %cst_58 : f32 to vector<72x1xf32>
    %70 = arith.addf %68, %69 : vector<72x1xf32>
    %71 = math.rsqrt %70 : vector<72x1xf32>
    %72 = vector.broadcast %71 : vector<72x1xf32> to vector<72x8xf32>
    %73 = arith.mulf %63, %72 : vector<72x8xf32>
    %c0_59 = arith.constant 0 : index
    %c0_60 = arith.constant 0 : index
    %74 = vector.load %arg4[%c0_59, %c0_60] : memref<1x8xf32, #tpu.memory_space<vmem>>, vector<1x8xf32>
    %75 = vector.broadcast %74 : vector<1x8xf32> to vector<72x8xf32>
    %76 = arith.mulf %73, %75 : vector<72x8xf32>
    %c0_61 = arith.constant 0 : index
    %c0_62 = arith.constant 0 : index
    %77 = vector.load %arg5[%c0_61, %c0_62] : memref<1x8xf32, #tpu.memory_space<vmem>>, vector<1x8xf32>
    %78 = vector.broadcast %77 : vector<1x8xf32> to vector<72x8xf32>
    %79 = arith.addf %76, %78 : vector<72x8xf32>
    %80 = vector.extract_strided_slice %79 {offsets = [0, 0], sizes = [8, 8], strides = [1, 1]} : vector<72x8xf32> to vector<8x8xf32>
    %c0_63 = arith.constant 0 : index
    %c0_64 = arith.constant 0 : index
    %c0_65 = arith.constant 0 : index
    %c0_66 = arith.constant 0 : index
    %81 = vector.load %arg6[%c0_63, %c0_64, %c0_65, %c0_66] : memref<1x8x8x8xf32, #tpu.memory_space<vmem>>, vector<1x1x8x8xf32>
    %82 = vector.shape_cast %81 : vector<1x1x8x8xf32> to vector<8x8xf32>
    %83 = vector.shape_cast %80 : vector<8x8xf32> to vector<1x1x8x8xf32>
    tpu.vector_store %arg6[%c0_63, %c0_64, %c0_65, %c0_66], %83 {strides = array<i32>} : memref<1x8x8x8xf32, #tpu.memory_space<vmem>>, vector<1x1x8x8xf32>,
    %84 = vector.extract_strided_slice %79 {offsets = [9, 0], sizes = [8, 8], strides = [1, 1]} : vector<72x8xf32> to vector<8x8xf32>
    %c0_67 = arith.constant 0 : index
    %c1_68 = arith.constant 1 : index
    %c0_69 = arith.constant 0 : index
    %c0_70 = arith.constant 0 : index
    %85 = vector.load %arg6[%c0_67, %c1_68, %c0_69, %c0_70] : memref<1x8x8x8xf32, #tpu.memory_space<vmem>>, vector<1x1x8x8xf32>
    %86 = vector.shape_cast %85 : vector<1x1x8x8xf32> to vector<8x8xf32>
    %87 = vector.shape_cast %84 : vector<8x8xf32> to vector<1x1x8x8xf32>
    tpu.vector_store %arg6[%c0_67, %c1_68, %c0_69, %c0_70], %87 {strides = array<i32>} : memref<1x8x8x8xf32, #tpu.memory_space<vmem>>, vector<1x1x8x8xf32>,
    %88 = vector.extract_strided_slice %79 {offsets = [18, 0], sizes = [8, 8], strides = [1, 1]} : vector<72x8xf32> to vector<8x8xf32>
    %c0_71 = arith.constant 0 : index
    %c2_72 = arith.constant 2 : index
    %c0_73 = arith.constant 0 : index
    %c0_74 = arith.constant 0 : index
    %89 = vector.load %arg6[%c0_71, %c2_72, %c0_73, %c0_74] : memref<1x8x8x8xf32, #tpu.memory_space<vmem>>, vector<1x1x8x8xf32>
    %90 = vector.shape_cast %89 : vector<1x1x8x8xf32> to vector<8x8xf32>
    %91 = vector.shape_cast %88 : vector<8x8xf32> to vector<1x1x8x8xf32>
    tpu.vector_store %arg6[%c0_71, %c2_72, %c0_73, %c0_74], %91 {strides = array<i32>} : memref<1x8x8x8xf32, #tpu.memory_space<vmem>>, vector<1x1x8x8xf32>,
    %92 = vector.extract_strided_slice %79 {offsets = [27, 0], sizes = [8, 8], strides = [1, 1]} : vector<72x8xf32> to vector<8x8xf32>
    %c0_75 = arith.constant 0 : index
    %c3_76 = arith.constant 3 : index
    %c0_77 = arith.constant 0 : index
    %c0_78 = arith.constant 0 : index
    %93 = vector.load %arg6[%c0_75, %c3_76, %c0_77, %c0_78] : memref<1x8x8x8xf32, #tpu.memory_space<vmem>>, vector<1x1x8x8xf32>
    %94 = vector.shape_cast %93 : vector<1x1x8x8xf32> to vector<8x8xf32>
    %95 = vector.shape_cast %92 : vector<8x8xf32> to vector<1x1x8x8xf32>
    tpu.vector_store %arg6[%c0_75, %c3_76, %c0_77, %c0_78], %95 {strides = array<i32>} : memref<1x8x8x8xf32, #tpu.memory_space<vmem>>, vector<1x1x8x8xf32>,
    %96 = vector.extract_strided_slice %79 {offsets = [36, 0], sizes = [8, 8], strides = [1, 1]} : vector<72x8xf32> to vector<8x8xf32>
    %c0_79 = arith.constant 0 : index
    %c4_80 = arith.constant 4 : index
    %c0_81 = arith.constant 0 : index
    %c0_82 = arith.constant 0 : index
    %97 = vector.load %arg6[%c0_79, %c4_80, %c0_81, %c0_82] : memref<1x8x8x8xf32, #tpu.memory_space<vmem>>, vector<1x1x8x8xf32>
    %98 = vector.shape_cast %97 : vector<1x1x8x8xf32> to vector<8x8xf32>
    %99 = vector.shape_cast %96 : vector<8x8xf32> to vector<1x1x8x8xf32>
    tpu.vector_store %arg6[%c0_79, %c4_80, %c0_81, %c0_82], %99 {strides = array<i32>} : memref<1x8x8x8xf32, #tpu.memory_space<vmem>>, vector<1x1x8x8xf32>,
    %100 = vector.extract_strided_slice %79 {offsets = [45, 0], sizes = [8, 8], strides = [1, 1]} : vector<72x8xf32> to vector<8x8xf32>
    %c0_83 = arith.constant 0 : index
    %c5_84 = arith.constant 5 : index
    %c0_85 = arith.constant 0 : index
    %c0_86 = arith.constant 0 : index
    %101 = vector.load %arg6[%c0_83, %c5_84, %c0_85, %c0_86] : memref<1x8x8x8xf32, #tpu.memory_space<vmem>>, vector<1x1x8x8xf32>
    %102 = vector.shape_cast %101 : vector<1x1x8x8xf32> to vector<8x8xf32>
    %103 = vector.shape_cast %100 : vector<8x8xf32> to vector<1x1x8x8xf32>
    tpu.vector_store %arg6[%c0_83, %c5_84, %c0_85, %c0_86], %103 {strides = array<i32>} : memref<1x8x8x8xf32, #tpu.memory_space<vmem>>, vector<1x1x8x8xf32>,
    %104 = vector.extract_strided_slice %79 {offsets = [54, 0], sizes = [8, 8], strides = [1, 1]} : vector<72x8xf32> to vector<8x8xf32>
    %c0_87 = arith.constant 0 : index
    %c6_88 = arith.constant 6 : index
    %c0_89 = arith.constant 0 : index
    %c0_90 = arith.constant 0 : index
    %105 = vector.load %arg6[%c0_87, %c6_88, %c0_89, %c0_90] : memref<1x8x8x8xf32, #tpu.memory_space<vmem>>, vector<1x1x8x8xf32>
    %106 = vector.shape_cast %105 : vector<1x1x8x8xf32> to vector<8x8xf32>
    %107 = vector.shape_cast %104 : vector<8x8xf32> to vector<1x1x8x8xf32>
    tpu.vector_store %arg6[%c0_87, %c6_88, %c0_89, %c0_90], %107 {strides = array<i32>} : memref<1x8x8x8xf32, #tpu.memory_space<vmem>>, vector<1x1x8x8xf32>,
    %108 = vector.extract_strided_slice %79 {offsets = [63, 0], sizes = [8, 8], strides = [1, 1]} : vector<72x8xf32> to vector<8x8xf32>
    %c0_91 = arith.constant 0 : index
    %c7_92 = arith.constant 7 : index
    %c0_93 = arith.constant 0 : index
    %c0_94 = arith.constant 0 : index
    %109 = vector.load %arg6[%c0_91, %c7_92, %c0_93, %c0_94] : memref<1x8x8x8xf32, #tpu.memory_space<vmem>>, vector<1x1x8x8xf32>
    %110 = vector.shape_cast %109 : vector<1x1x8x8xf32> to vector<8x8xf32>
    %111 = vector.shape_cast %108 : vector<8x8xf32> to vector<1x1x8x8xf32>
    tpu.vector_store %arg6[%c0_91, %c7_92, %c0_93, %c0_94], %111 {strides = array<i32>} : memref<1x8x8x8xf32, #tpu.memory_space<vmem>>, vector<1x1x8x8xf32>,
    return
  }
  func.func @transform_0(%arg0: i32) -> (i32, i32, i32) {
    %c0_i32 = arith.constant 0 : i32
    %c0_i32_0 = arith.constant 0 : i32
    %c0_i32_1 = arith.constant 0 : i32
    return %arg0, %c0_i32, %c0_i32_0 : i32, i32, i32
  }
  func.func @transform_1(%arg0: i32) -> (i32, i32, i32) {
    %c0_i32 = arith.constant 0 : i32
    %c0_i32_0 = arith.constant 0 : i32
    %c0_i32_1 = arith.constant 0 : i32
    %c0_i32_2 = arith.constant 0 : i32
    return %c0_i32, %c0_i32_0, %c0_i32_1 : i32, i32, i32
  }
  func.func @transform_2(%arg0: i32) -> (i32, i32) {
    %c0_i32 = arith.constant 0 : i32
    %c0_i32_0 = arith.constant 0 : i32
    %c0_i32_1 = arith.constant 0 : i32
    return %c0_i32, %c0_i32_0 : i32, i32
  }
  func.func @transform_3(%arg0: i32) -> (i32, i32) {
    %c0_i32 = arith.constant 0 : i32
    %c0_i32_0 = arith.constant 0 : i32
    %c0_i32_1 = arith.constant 0 : i32
    return %c0_i32, %c0_i32_0 : i32, i32
  }
  func.func @transform_4(%arg0: i32) -> (i32, i32) {
    %c0_i32 = arith.constant 0 : i32
    %c0_i32_0 = arith.constant 0 : i32
    %c0_i32_1 = arith.constant 0 : i32
    return %c0_i32, %c0_i32_0 : i32, i32
  }
  func.func @transform_5(%arg0: i32) -> (i32, i32, i32, i32) {
    %c0_i32 = arith.constant 0 : i32
    %c0_i32_0 = arith.constant 0 : i32
    %c0_i32_1 = arith.constant 0 : i32
    %c0_i32_2 = arith.constant 0 : i32
    return %arg0, %c0_i32, %c0_i32_0, %c0_i32_1 : i32, i32, i32, i32
  }
}

</mosaic_0001>

<llo_original>
// kernel: _merge_block_impl.1
$region0: #{_merge_block_impl.1}
  #allocation0 [shape = 'u32[]', space=smem, size = 0x4, offset = 0x4, fixed_abs, tag = 'smem constant byte address 0x4 - core index']
  #allocation1 [shape = 'u32[144,128]{1,0:T(1,128)}', space=vmem, size = 0x12000, scoped, tag = 'internal scratch']
  %s0 = inlined_call_operand.vmem [shape: bf16[8,88,8], index: 0, kind: input, shape index: {}]
  %s1 = inlined_call_operand.vmem [shape: bf16[9,8,8], index: 1, kind: input, shape index: {}]
  %s2 = inlined_call_operand.vmem [shape: f32[1,8], index: 2, kind: input, shape index: {}]
  %s3 = inlined_call_operand.vmem [shape: f32[1,8], index: 3, kind: input, shape index: {}]
  %s4 = inlined_call_operand.vmem [shape: f32[1,8], index: 4, kind: input, shape index: {}]
  %s5 = inlined_call_operand.vmem [shape: f32[2,8,8,8], index: 5, kind: output, shape index: {}]
  %s6 = sld [smem:[#allocation0]]
  $region53: #{_merge_block_impl.1} parent=0
    _
  %s8 = ssub.s32 1, %s6
  %s9 = scalar_select 0, %s8, %s6
  loop: start=0, step=1, limit=4
  $region2: #{_merge_block_impl.1} parent=0 // loop_pre_header
    _
  $region3: #{_merge_block_impl.1} parent=0 // loop_header
    %s11 = sphi 0, %s15
    %p12 = scmp.ge.s32.totalorder %s11, 4
    %s21 = sphi 0, %s23
    %s24 = sphi 0, %s21
    %s25 = sphi 0, %s24
    %s41 = sphi 0, %s25
    %s45 = sphi 0, %s45
    %s47 = sphi 0, %s45
    %s48 = sphi 0, %s47
    %s62 = sphi 0, %s48
    %s66 = sphi 0, %s66
    %s68 = sphi 0, %s66
    %s69 = sphi 0, %s68
    %s83 = sphi 0, %s69
    %s87 = sphi 0, %s87
    %s89 = sphi 0, %s87
    %s90 = sphi 0, %s89
    %s104 = sphi 0, %s90
    %s108 = sphi 0, %s108
    %s110 = sphi 0, %s108
    %s111 = sphi 0, %s110
    %s125 = sphi 0, %s111
    %s131 = sphi 0, %s133
    %s134 = sphi 0, %s131
    %s135 = sphi 0, %s134
    %s151 = sphi 0, %s135
  $region4: #{_merge_block_impl.1} parent=0 // loop_header_branch
    %14 = sbr.rel (%p12) target = $region8
  $region5: #{_merge_block_impl.1} parent=0 // loop_body
    %s16 = ssub.s32 %s11, 1
    %s17 = ssub.s32 %s11, 2
    %s18 = sadd.s32 %s11, 1
    %s19 = ssub.s32 %s11, %s18
    %p20 = scmp.eq.s32.totalorder %s19, 0
    %s22 = sadd.s32 %s21, 1
    %s23 = scalar_select %p20, %s21, %s22
    %p26 = pneg %p20
    %p27 = scmp.eq.s32.totalorder %s11, 1
    %p28 = por %p26, %p27
    %p29 = scmp.ne.s32.totalorder %s21, %s24
    %p30 = scmp.eq.s32.totalorder %s11, 0
    %p31 = por %p29, %p30
    %p32 = scmp.ne.s32.totalorder %s21, %s24
    %p33 = scmp.eq.s32.totalorder %s16, 1
    %p34 = por %p32, %p33
    %p35 = scmp.ne.s32.totalorder %s24, %s25
    %p36 = scmp.eq.s32.totalorder %s16, 0
    %p37 = por %p35, %p36
    %p38 = scmp.ne.s32.totalorder %s24, %s25
    %p39 = scmp.eq.s32.totalorder %s17, 1
    %p40 = por %p38, %p39
    %p42 = scmp.ne.s32.totalorder %s25, %s41
    %p43 = scmp.eq.s32.totalorder %s17, 0
    %p44 = por %p42, %p43
    %s46 = sadd.s32 %s45, 1
    %p49 = scmp.eq.s32.totalorder %s11, 1
    %p50 = scmp.ne.s32.totalorder %s45, %s47
    %p51 = scmp.eq.s32.totalorder %s11, 0
    %p52 = por %p50, %p51
    %p53 = scmp.ne.s32.totalorder %s45, %s47
    %p54 = scmp.eq.s32.totalorder %s16, 1
    %p55 = por %p53, %p54
    %p56 = scmp.ne.s32.totalorder %s47, %s48
    %p57 = scmp.eq.s32.totalorder %s16, 0
    %p58 = por %p56, %p57
    %p59 = scmp.ne.s32.totalorder %s47, %s48
    %p60 = scmp.eq.s32.totalorder %s17, 1
    %p61 = por %p59, %p60
    %p63 = scmp.ne.s32.totalorder %s48, %s62
    %p64 = scmp.eq.s32.totalorder %s17, 0
    %p65 = por %p63, %p64
    %s67 = sadd.s32 %s66, 1
    %p70 = scmp.eq.s32.totalorder %s11, 1
    %p71 = scmp.ne.s32.totalorder %s66, %s68
    %p72 = scmp.eq.s32.totalorder %s11, 0
    %p73 = por %p71, %p72
    %p74 = scmp.ne.s32.totalorder %s66, %s68
    %p75 = scmp.eq.s32.totalorder %s16, 1
    %p76 = por %p74, %p75
    %p77 = scmp.ne.s32.totalorder %s68, %s69
    %p78 = scmp.eq.s32.totalorder %s16, 0
    %p79 = por %p77, %p78
    %p80 = scmp.ne.s32.totalorder %s68, %s69
    %p81 = scmp.eq.s32.totalorder %s17, 1
    %p82 = por %p80, %p81
    %p84 = scmp.ne.s32.totalorder %s69, %s83
    %p85 = scmp.eq.s32.totalorder %s17, 0
    %p86 = por %p84, %p85
    %s88 = sadd.s32 %s87, 1
    %p91 = scmp.eq.s32.totalorder %s11, 1
    %p92 = scmp.ne.s32.totalorder %s87, %s89
    %p93 = scmp.eq.s32.totalorder %s11, 0
    %p94 = por %p92, %p93
    %p95 = scmp.ne.s32.totalorder %s87, %s89
    %p96 = scmp.eq.s32.totalorder %s16, 1
    %p97 = por %p95, %p96
    %p98 = scmp.ne.s32.totalorder %s89, %s90
    %p99 = scmp.eq.s32.totalorder %s16, 0
    %p100 = por %p98, %p99
    %p101 = scmp.ne.s32.totalorder %s89, %s90
    %p102 = scmp.eq.s32.totalorder %s17, 1
    %p103 = por %p101, %p102
    %p105 = scmp.ne.s32.totalorder %s90, %s104
    %p106 = scmp.eq.s32.totalorder %s17, 0
    %p107 = por %p105, %p106
    %s109 = sadd.s32 %s108, 1
    %p112 = scmp.eq.s32.totalorder %s11, 1
    %p113 = scmp.ne.s32.totalorder %s108, %s110
    %p114 = scmp.eq.s32.totalorder %s11, 0
    %p115 = por %p113, %p114
    %p116 = scmp.ne.s32.totalorder %s108, %s110
    %p117 = scmp.eq.s32.totalorder %s16, 1
    %p118 = por %p116, %p117
    %p119 = scmp.ne.s32.totalorder %s110, %s111
    %p120 = scmp.eq.s32.totalorder %s16, 0
    %p121 = por %p119, %p120
    %p122 = scmp.ne.s32.totalorder %s110, %s111
    %p123 = scmp.eq.s32.totalorder %s17, 1
    %p124 = por %p122, %p123
    %p126 = scmp.ne.s32.totalorder %s111, %s125
    %p127 = scmp.eq.s32.totalorder %s17, 0
    %p128 = por %p126, %p127
    %s129 = ssub.s32 %s11, %s18
    %p130 = scmp.eq.s32.totalorder %s129, 0
    %s132 = sadd.s32 %s131, 1
    %s133 = scalar_select %p130, %s131, %s132
    %p136 = pneg %p130
    %p137 = scmp.eq.s32.totalorder %s11, 1
    %p138 = por %p136, %p137
    %p139 = scmp.ne.s32.totalorder %s131, %s134
    %p140 = scmp.eq.s32.totalorder %s11, 0
    %p141 = por %p139, %p140
    %p142 = scmp.ne.s32.totalorder %s131, %s134
    %p143 = scmp.eq.s32.totalorder %s16, 1
    %p144 = por %p142, %p143
    %p145 = scmp.ne.s32.totalorder %s134, %s135
    %p146 = scmp.eq.s32.totalorder %s16, 0
    %p147 = por %p145, %p146
    %p148 = scmp.ne.s32.totalorder %s134, %s135
    %p149 = scmp.eq.s32.totalorder %s17, 1
    %p150 = por %p148, %p149
    %p152 = scmp.ne.s32.totalorder %s135, %s151
    %p153 = scmp.eq.s32.totalorder %s17, 0
    %p154 = por %p152, %p153
    %p155 = scmp.le.s32.totalorder 1, %s11
    %p156 = scmp.lt.s32.totalorder %s11, 3
    %p157 = pnand %p155, %p156
    %p158 = pneg %p157
    // Predicated region
    $region9: #{_merge_block_impl.1} parent=5 // pred_check
      _
    $region10: #{_merge_block_impl.1} parent=5 // pred_check_branch
      %160 = sbr.rel (%p157) target = $region12
    $region11: #{_merge_block_impl.1} parent=5 // pred_region
      %s161 = ssub.s32 %s11, 1
      // Predicated region
      $region13: #{_merge_block_impl.1} parent=11 // pred_check
        %p162 = pneg %p58
      $region14: #{_merge_block_impl.1} parent=11 // pred_check_branch
        %164 = sbr.rel (%p162) target = $region16
      $region15: #{_merge_block_impl.1} parent=11 // pred_region
        _
      $region16: #{_merge_block_impl.1} parent=11 // pred_fallthru
        _
      // Predicated region
      $region17: #{_merge_block_impl.1} parent=11 // pred_check
        %p165 = pneg %p79
      $region18: #{_merge_block_impl.1} parent=11 // pred_check_branch
        %167 = sbr.rel (%p165) target = $region20
      $region19: #{_merge_block_impl.1} parent=11 // pred_region
        _
      $region20: #{_merge_block_impl.1} parent=11 // pred_fallthru
        _
      // Predicated region
      $region21: #{_merge_block_impl.1} parent=11 // pred_check
        %p168 = pneg %p100
      $region22: #{_merge_block_impl.1} parent=11 // pred_check_branch
        %170 = sbr.rel (%p168) target = $region24
      $region23: #{_merge_block_impl.1} parent=11 // pred_region
        _
      $region24: #{_merge_block_impl.1} parent=11 // pred_fallthru
        _
      // Predicated region
      $region25: #{_merge_block_impl.1} parent=11 // pred_check
        %p171 = pneg %p121
      $region26: #{_merge_block_impl.1} parent=11 // pred_check_branch
        %173 = sbr.rel (%p171) target = $region28
      $region27: #{_merge_block_impl.1} parent=11 // pred_region
        _
      $region28: #{_merge_block_impl.1} parent=11 // pred_fallthru
        _
    $region12: #{_merge_block_impl.1} parent=5 // pred_fallthru
      _
    %p174 = scmp.lt.s32.totalorder %s11, 2
    // Predicated region
    $region29: #{_merge_block_impl.1} parent=5 // pred_check
      %p175 = pneg %p174
    $region30: #{_merge_block_impl.1} parent=5 // pred_check_branch
      %177 = sbr.rel (%p175) target = $region32
    $region31: #{_merge_block_impl.1} parent=5 // pred_region
      // Predicated region
      $region33: #{_merge_block_impl.1} parent=31 // pred_check
        %p178 = pneg %p31
      $region34: #{_merge_block_impl.1} parent=31 // pred_check_branch
        %180 = sbr.rel (%p178) target = $region36
      $region35: #{_merge_block_impl.1} parent=31 // pred_region
        %s181 = smul.u32 4, %s11
        %p182 = scmp.lt.s32.totalorder %s181, 7
        %s183 = scalar_select %p182, %s181, 7
        %s184 = smul.addr %s183, 11
        %s185 = smul.addr %s184, 4
        %s186 = scalar_lea.vmem %s0, %s185
        %s187 = smul.u32 4, %s11
      $region36: #{_merge_block_impl.1} parent=31 // pred_fallthru
        _
    $region32: #{_merge_block_impl.1} parent=5 // pred_fallthru
      _
    %p188 = scmp.le.s32.totalorder 1, %s11
    %p189 = scmp.lt.s32.totalorder %s11, 3
    %p190 = pnand %p188, %p189
    %p191 = pneg %p190
    // Predicated region
    $region37: #{_merge_block_impl.1} parent=5 // pred_check
      _
    $region38: #{_merge_block_impl.1} parent=5 // pred_check_branch
      %193 = sbr.rel (%p190) target = $region40
    $region39: #{_merge_block_impl.1} parent=5 // pred_region
      %s194 = ssub.s32 %s11, 1
      %s195 = smul.u32 4, %s16
      %p196 = scmp.lt.s32.totalorder %s195, 7
      %s197 = scalar_select %p196, %s195, 7
      %s198 = smul.addr %s197, 11
      %s199 = smul.addr %s198, 4
      %s200 = scalar_lea.vmem %s0, %s199
      %p201 = pneg %p37
      %p202 = pneg %p34
      %p203 = pneg %p58
      %p204 = pneg %p55
      %p205 = pneg %p79
      %p206 = pneg %p76
      %p207 = pneg %p100
      %p208 = pneg %p97
      %p209 = pneg %p121
      %p210 = pneg %p118
      %p211 = pneg %p147
      %p212 = pneg %p144
      %p213 = scmp.lt.s32.totalorder %s16, 1
      %s214 = scalar_select %p213, %s16, 1
      %s215 = smul.addr %s214, 8
      %s216 = smul.addr %s215, 8
      %s217 = scalar_lea.vmem %s5, %s216
      %s218 = smul.u32 4, %s16
      %p219 = scmp.lt.s32.totalorder %s218, 7
      %s220 = scalar_select %p219, %s218, 7
      %s221 = smul.addr %s220, 11
      %s222 = smul.addr %s221, 4
      %s223 = scalar_lea.vmem %s0, %s222
      %s224 = smul.u32 4, %s16
      %p225 = scmp.lt.s32.totalorder %s16, 1
      %s226 = scalar_select %p225, %s16, 1
      %s227 = smul.addr %s226, 8
      %s228 = smul.addr %s227, 8
      %s229 = scalar_lea.vmem %s5, %s228
      %v231 = vld [vmem:[%s223] sm:$0xf]
      %v232 = vld [vmem:[%s223 + $0x4] sm:$0xf]
      %v233 = vld [vmem:[%s223 + $0x8] sm:$0xf]
      %v234 = vld [vmem:[%s223 + $0xc] sm:$0xf]
      %v235 = vld [vmem:[%s223 + $0x10] sm:$0xf]
      %v236 = vld [vmem:[%s223 + $0x14] sm:$0xf]
      %v237 = vld [vmem:[%s223 + $0x18] sm:$0xf]
      %v238 = vld [vmem:[%s223 + $0x1c] sm:$0xf]
      %v239 = vld [vmem:[%s223 + $0x20] sm:$0xf]
      %v240 = vld [vmem:[%s1] sm:$0xf]
      %s241 = scalar_lea.vmem %s223, 44
      %v242 = vld [vmem:[%s241] sm:$0xf]
      %v243 = vld [vmem:[%s241 + $0x4] sm:$0xf]
      %v244 = vld [vmem:[%s241 + $0x8] sm:$0xf]
      %v245 = vld [vmem:[%s241 + $0xc] sm:$0xf]
      %v246 = vld [vmem:[%s241 + $0x10] sm:$0xf]
      %v247 = vld [vmem:[%s241 + $0x14] sm:$0xf]
      %v248 = vld [vmem:[%s241 + $0x18] sm:$0xf]
      %v249 = vld [vmem:[%s241 + $0x1c] sm:$0xf]
      %v250 = vld [vmem:[%s241 + $0x20] sm:$0xf]
      %s251 = scalar_lea.vmem %s1, 4
      %v252 = vld [vmem:[%s251] sm:$0xf]
      %v262 = vunpack.c.l.b16 %v242
      %v263 = vunpack.c.l.b16 %v243
      %v264 = vunpack.c.l.b16 %v244
      %v265 = vunpack.c.l.b16 %v245
      %v266 = vunpack.c.l.b16 %v246
      %v267 = vunpack.c.l.b16 %v247
      %v268 = vunpack.c.l.b16 %v248
      %v269 = vunpack.c.l.b16 %v249
      %v270 = vunpack.c.l.b16 %v250
      %v271 = vpack.c.b16 %v263, %v262
      %v272 = vpack.c.b16 %v265, %v264
      %v273 = vpack.c.b16 %v267, %v266
      %v274 = vpack.c.b16 %v269, %v268
      %v275 = vpack.c.b16 %v270, %v270
      %vm276 = vcmask 64512
      %v278 = vsel %vm276, %v271, 0
      %v281 = vsel %vm276, %v272, 0
      %v284 = vsel %vm276, %v273, 0
      %v287 = vsel %vm276, %v274, 0
      %v290 = vsel %vm276, %v275, 0
      %vm292 = vcmask 1043456
      %v294 = vsel %vm292, %v252, 0
      %296 = vmatprep.subr.bf16.mxu0 0
      %297 = vmatpush1.bf16.msra.mxu0 0
      %298 = vmatprep.subr.bf16.mxu0 0
      %299 = vmatpush1.bf16.msra.mxu0 0
      %300 = vmatprep.subr.bf16.mxu0 0
      %301 = vmatpush1.bf16.msra.mxu0 0
      %302 = vmatprep.subr.bf16.mxu0 0
      %303 = vmatpush1.bf16.msra.mxu0 0
      %304 = vmatprep.subr.bf16.mxu0 0
      %305 = vmatpush1.bf16.msra.mxu0 0
      %306 = vmatprep.subr.bf16.mxu0 0
      %307 = vmatpush1.bf16.msra.mxu0 0
      %308 = vmatprep.subr.bf16.mxu0 0
      %309 = vmatpush1.bf16.msra.mxu0 0
      %310 = vmatprep.subr.bf16.mxu0 0
      %311 = vmatpush1.bf16.msra.mxu0 %v294
      %312 = vmatprep.subr.bf16.mxu0 0
      %313 = vmatpush2.bf16.msra.mxu0 0
      %314 = vmatprep.subr.bf16.mxu0 0
      %315 = vmatpush2.bf16.msra.mxu0 0
      %316 = vmatprep.subr.bf16.mxu0 0
      %317 = vmatpush2.bf16.msra.mxu0 0
      %318 = vmatprep.subr.bf16.mxu0 0
      %319 = vmatpush2.bf16.msra.mxu0 0
      %320 = vmatprep.subr.bf16.mxu0 0
      %321 = vmatpush2.bf16.msra.mxu0 0
      %322 = vmatprep.subr.bf16.mxu0 0
      %323 = vmatpush2.bf16.msra.mxu0 0
      %324 = vmatprep.subr.bf16.mxu0 0
      %325 = vmatpush2.bf16.msra.mxu0 0
      %326 = vmatprep.subr.bf16.mxu0 0
      %327 = vmatpush2.bf16.msra.mxu0 0
      %328 = vmatprep.mubr.bf16.mxu0 0
      %329 = vmatmul.mubr.bf16.gmra.mxu0 %v278
      %v330 = vpop.f32.mrf.mxu0
      %v331 = vadd.f32 0.0, %v330
      %v332 = vpop.f32.mrf.mxu0
      %v333 = vpop.f32.mrf.mxu0
      %v334 = vadd.f32 0.0, %v333
      %v335 = vpop.f32.mrf.mxu0
      %336 = vmatprep.mubr.bf16.mxu0 0
      %337 = vmatmul.mubr.bf16.gmra.mxu0 %v281
      %v338 = vpop.f32.mrf.mxu0
      %v339 = vadd.f32 0.0, %v338
      %v340 = vpop.f32.mrf.mxu0
      %v341 = vpop.f32.mrf.mxu0
      %v342 = vadd.f32 0.0, %v341
      %v343 = vpop.f32.mrf.mxu0
      %344 = vmatprep.mubr.bf16.mxu0 0
      %345 = vmatmul.mubr.bf16.gmra.mxu0 %v284
      %v346 = vpop.f32.mrf.mxu0
      %v347 = vadd.f32 0.0, %v346
      %v348 = vpop.f32.mrf.mxu0
      %v349 = vpop.f32.mrf.mxu0
      %v350 = vadd.f32 0.0, %v349
      %v351 = vpop.f32.mrf.mxu0
      %352 = vmatprep.mubr.bf16.mxu0 0
      %353 = vmatmul.mubr.bf16.gmra.mxu0 %v287
      %v354 = vpop.f32.mrf.mxu0
      %v355 = vadd.f32 0.0, %v354
      %v356 = vpop.f32.mrf.mxu0
      %v357 = vpop.f32.mrf.mxu0
      %v358 = vadd.f32 0.0, %v357
      %v359 = vpop.f32.mrf.mxu0
      %360 = vmatprep.mubr.bf16.mxu0 0
      %361 = vmatmul.mubr.bf16.gmra.mxu0 %v290
      %v362 = vpop.f32.mrf.mxu0
      %v363 = vadd.f32 0.0, %v362
      %v364 = vpop.f32.mrf.mxu0
      %v365 = vpop.f32.mrf.mxu0
      %v366 = vpop.f32.mrf.mxu0
      %367 = vdwg.mxu0
      %v377 = vunpack.c.l.b16 %v231
      %v378 = vunpack.c.l.b16 %v232
      %v379 = vunpack.c.l.b16 %v233
      %v380 = vunpack.c.l.b16 %v234
      %v381 = vunpack.c.l.b16 %v235
      %v382 = vunpack.c.l.b16 %v236
      %v383 = vunpack.c.l.b16 %v237
      %v384 = vunpack.c.l.b16 %v238
      %v385 = vunpack.c.l.b16 %v239
      %v386 = vpack.c.b16 %v378, %v377
      %v387 = vpack.c.b16 %v380, %v379
      %v388 = vpack.c.b16 %v382, %v381
      %v389 = vpack.c.b16 %v384, %v383
      %v390 = vpack.c.b16 %v385, %v385
      %v392 = vsel %vm276, %v386, 0
      %v395 = vsel %vm276, %v387, 0
      %v398 = vsel %vm276, %v388, 0
      %v401 = vsel %vm276, %v389, 0
      %v404 = vsel %vm276, %v390, 0
      %v407 = vsel %vm292, %v240, 0
      %409 = vmatprep.subr.bf16.mxu0 0
      %410 = vmatpush1.bf16.msra.mxu0 0
      %411 = vmatprep.subr.bf16.mxu0 0
      %412 = vmatpush1.bf16.msra.mxu0 0
      %413 = vmatprep.subr.bf16.mxu0 0
      %414 = vmatpush1.bf16.msra.mxu0 0
      %415 = vmatprep.subr.bf16.mxu0 0
      %416 = vmatpush1.bf16.msra.mxu0 0
      %417 = vmatprep.subr.bf16.mxu0 0
      %418 = vmatpush1.bf16.msra.mxu0 0
      %419 = vmatprep.subr.bf16.mxu0 0
      %420 = vmatpush1.bf16.msra.mxu0 0
      %421 = vmatprep.subr.bf16.mxu0 0
      %422 = vmatpush1.bf16.msra.mxu0 0
      %423 = vmatprep.subr.bf16.mxu0 0
      %424 = vmatpush1.bf16.msra.mxu0 %v407
      %425 = vmatprep.subr.bf16.mxu0 0
      %426 = vmatpush2.bf16.msra.mxu0 0
      %427 = vmatprep.subr.bf16.mxu0 0
      %428 = vmatpush2.bf16.msra.mxu0 0
      %429 = vmatprep.subr.bf16.mxu0 0
      %430 = vmatpush2.bf16.msra.mxu0 0
      %431 = vmatprep.subr.bf16.mxu0 0
      %432 = vmatpush2.bf16.msra.mxu0 0
      %433 = vmatprep.subr.bf16.mxu0 0
      %434 = vmatpush2.bf16.msra.mxu0 0
      %435 = vmatprep.subr.bf16.mxu0 0
      %436 = vmatpush2.bf16.msra.mxu0 0
      %437 = vmatprep.subr.bf16.mxu0 0
      %438 = vmatpush2.bf16.msra.mxu0 0
      %439 = vmatprep.subr.bf16.mxu0 0
      %440 = vmatpush2.bf16.msra.mxu0 0
      %441 = vmatprep.mubr.bf16.mxu0 0
      %442 = vmatmul.mubr.bf16.gmra.mxu0 %v392
      %v443 = vpop.f32.mrf.mxu0
      %v444 = vadd.f32 %v331, %v443
      %v445 = vpop.f32.mrf.mxu0
      %v446 = vpop.f32.mrf.mxu0
      %v447 = vadd.f32 %v334, %v446
      %v448 = vpop.f32.mrf.mxu0
      %449 = vmatprep.mubr.bf16.mxu0 0
      %450 = vmatmul.mubr.bf16.gmra.mxu0 %v395
      %v451 = vpop.f32.mrf.mxu0
      %v452 = vadd.f32 %v339, %v451
      %v453 = vpop.f32.mrf.mxu0
      %v454 = vpop.f32.mrf.mxu0
      %v455 = vadd.f32 %v342, %v454
      %v456 = vpop.f32.mrf.mxu0
      %457 = vmatprep.mubr.bf16.mxu0 0
      %458 = vmatmul.mubr.bf16.gmra.mxu0 %v398
      %v459 = vpop.f32.mrf.mxu0
      %v460 = vadd.f32 %v347, %v459
      %v461 = vpop.f32.mrf.mxu0
      %v462 = vpop.f32.mrf.mxu0
      %v463 = vadd.f32 %v350, %v462
      %v464 = vpop.f32.mrf.mxu0
      %465 = vmatprep.mubr.bf16.mxu0 0
      %466 = vmatmul.mubr.bf16.gmra.mxu0 %v401
      %v467 = vpop.f32.mrf.mxu0
      %v468 = vadd.f32 %v355, %v467
      %v469 = vpop.f32.mrf.mxu0
      %v470 = vpop.f32.mrf.mxu0
      %v471 = vadd.f32 %v358, %v470
      %v472 = vpop.f32.mrf.mxu0
      %473 = vmatprep.mubr.bf16.mxu0 0
      %474 = vmatmul.mubr.bf16.gmra.mxu0 %v404
      %v475 = vpop.f32.mrf.mxu0
      %v476 = vadd.f32 %v363, %v475
      %v477 = vpop.f32.mrf.mxu0
      %v478 = vpop.f32.mrf.mxu0
      %v479 = vpop.f32.mrf.mxu0
      %480 = vdwg.mxu0
      %v481 = vld [vmem:[%s223] sm:$0xf]
      %v482 = vld [vmem:[%s223 + $0x4] sm:$0xf]
      %v483 = vld [vmem:[%s223 + $0x8] sm:$0xf]
      %v484 = vld [vmem:[%s223 + $0xc] sm:$0xf]
      %v485 = vld [vmem:[%s223 + $0x10] sm:$0xf]
      %v486 = vld [vmem:[%s223 + $0x14] sm:$0xf]
      %v487 = vld [vmem:[%s223 + $0x18] sm:$0xf]
      %v488 = vld [vmem:[%s223 + $0x1c] sm:$0xf]
      %v489 = vld [vmem:[%s223 + $0x20] sm:$0xf]
      %v490 = vld [vmem:[%s223 + $0x24] sm:$0x1]
      %s491 = scalar_lea.vmem %s1, 8
      %v492 = vld [vmem:[%s491] sm:$0xf]
      %v503 = vunpack.c.l.b16 %v481
      %v504 = vunpack.c.l.b16 %v482
      %v505 = vunpack.c.l.b16 %v483
      %v506 = vunpack.c.l.b16 %v484
      %v507 = vunpack.c.l.b16 %v485
      %v508 = vunpack.c.l.b16 %v486
      %v509 = vunpack.c.l.b16 %v487
      %v510 = vunpack.c.l.b16 %v488
      %v511 = vunpack.c.l.b16 %v489
      %v512 = vunpack.c.l.b16 %v490
      %v513 = vpack.c.b16 %v504, %v503
      %v514 = vpack.c.b16 %v506, %v505
      %v515 = vpack.c.b16 %v508, %v507
      %v516 = vpack.c.b16 %v510, %v509
      %v517 = vpack.c.b16 %v512, %v511
      %vm518 = vsmask.f32 7424
      %v520 = vshrl.u32 %v513, 16
      %v522 = vshll.u32 %v513, 16
      %v524 = vrot.slane %v522, 1
      %v525 = vor.u32 %v520, %v524
      %v527 = vshll.u32 %v514, 16
      %v529 = vrot.slane %v527, 1
      %v530 = vsel %vm518, %v525, %v529
      %v531 = vshrl.u32 %v514, 16
      %v533 = vor.u32 %v531, %v529
      %v535 = vshll.u32 %v515, 16
      %v537 = vrot.slane %v535, 1
      %v538 = vsel %vm518, %v533, %v537
      %v539 = vshrl.u32 %v515, 16
      %v541 = vor.u32 %v539, %v537
      %v543 = vshll.u32 %v516, 16
      %v545 = vrot.slane %v543, 1
      %v546 = vsel %vm518, %v541, %v545
      %v547 = vshrl.u32 %v516, 16
      %v549 = vor.u32 %v547, %v545
      %v551 = vshll.u32 %v517, 16
      %v553 = vrot.slane %v551, 1
      %v554 = vsel %vm518, %v549, %v553
      %v555 = vshrl.u32 %v517, 16
      %v557 = vor.u32 %v555, %v553
      %v559 = vsel %vm276, %v530, 0
      %v562 = vsel %vm276, %v538, 0
      %v565 = vsel %vm276, %v546, 0
      %v568 = vsel %vm276, %v554, 0
      %v571 = vsel %vm276, %v557, 0
      %v574 = vsel %vm292, %v492, 0
      %576 = vmatprep.subr.bf16.mxu0 0
      %577 = vmatpush1.bf16.msra.mxu0 0
      %578 = vmatprep.subr.bf16.mxu0 0
      %579 = vmatpush1.bf16.msra.mxu0 0
      %580 = vmatprep.subr.bf16.mxu0 0
      %581 = vmatpush1.bf16.msra.mxu0 0
      %582 = vmatprep.subr.bf16.mxu0 0
      %583 = vmatpush1.bf16.msra.mxu0 0
      %584 = vmatprep.subr.bf16.mxu0 0
      %585 = vmatpush1.bf16.msra.mxu0 0
      %586 = vmatprep.subr.bf16.mxu0 0
      %587 = vmatpush1.bf16.msra.mxu0 0
      %588 = vmatprep.subr.bf16.mxu0 0
      %589 = vmatpush1.bf16.msra.mxu0 0
      %590 = vmatprep.subr.bf16.mxu0 0
      %591 = vmatpush1.bf16.msra.mxu0 %v574
      %592 = vmatprep.subr.bf16.mxu0 0
      %593 = vmatpush2.bf16.msra.mxu0 0
      %594 = vmatprep.subr.bf16.mxu0 0
      %595 = vmatpush2.bf16.msra.mxu0 0
      %596 = vmatprep.subr.bf16.mxu0 0
      %597 = vmatpush2.bf16.msra.mxu0 0
      %598 = vmatprep.subr.bf16.mxu0 0
      %599 = vmatpush2.bf16.msra.mxu0 0
      %600 = vmatprep.subr.bf16.mxu0 0
      %601 = vmatpush2.bf16.msra.mxu0 0
      %602 = vmatprep.subr.bf16.mxu0 0
      %603 = vmatpush2.bf16.msra.mxu0 0
      %604 = vmatprep.subr.bf16.mxu0 0
      %605 = vmatpush2.bf16.msra.mxu0 0
      %606 = vmatprep.subr.bf16.mxu0 0
      %607 = vmatpush2.bf16.msra.mxu0 0
      %608 = vmatprep.mubr.bf16.mxu0 0
      %609 = vmatmul.mubr.bf16.gmra.mxu0 %v559
      %v610 = vpop.f32.mrf.mxu0
      %v611 = vadd.f32 0.0, %v610
      %v612 = vpop.f32.mrf.mxu0
      %v613 = vpop.f32.mrf.mxu0
      %v614 = vadd.f32 0.0, %v613
      %v615 = vpop.f32.mrf.mxu0
      %616 = vmatprep.mubr.bf16.mxu0 0
      %617 = vmatmul.mubr.bf16.gmra.mxu0 %v562
      %v618 = vpop.f32.mrf.mxu0
      %v619 = vadd.f32 0.0, %v618
      %v620 = vpop.f32.mrf.mxu0
      %v621 = vpop.f32.mrf.mxu0
      %v622 = vadd.f32 0.0, %v621
      %v623 = vpop.f32.mrf.mxu0
      %624 = vmatprep.mubr.bf16.mxu0 0
      %625 = vmatmul.mubr.bf16.gmra.mxu0 %v565
      %v626 = vpop.f32.mrf.mxu0
      %v627 = vadd.f32 0.0, %v626
      %v628 = vpop.f32.mrf.mxu0
      %v629 = vpop.f32.mrf.mxu0
      %v630 = vadd.f32 0.0, %v629
      %v631 = vpop.f32.mrf.mxu0
      %632 = vmatprep.mubr.bf16.mxu0 0
      %633 = vmatmul.mubr.bf16.gmra.mxu0 %v568
      %v634 = vpop.f32.mrf.mxu0
      %v635 = vadd.f32 0.0, %v634
      %v636 = vpop.f32.mrf.mxu0
      %v637 = vpop.f32.mrf.mxu0
      %v638 = vadd.f32 0.0, %v637
      %v639 = vpop.f32.mrf.mxu0
      %640 = vmatprep.mubr.bf16.mxu0 0
      %641 = vmatmul.mubr.bf16.gmra.mxu0 %v571
      %v642 = vpop.f32.mrf.mxu0
      %v643 = vadd.f32 0.0, %v642
      %v644 = vpop.f32.mrf.mxu0
      %v645 = vpop.f32.mrf.mxu0
      %v646 = vpop.f32.mrf.mxu0
      %647 = vdwg.mxu0
      %v648 = vadd.f32 %v444, %v611
      %v649 = vadd.f32 %v447, %v614
      %v650 = vadd.f32 %v452, %v619
      %v651 = vadd.f32 %v455, %v622
      %v652 = vadd.f32 %v460, %v627
      %v653 = vadd.f32 %v463, %v630
      %v654 = vadd.f32 %v468, %v635
      %v655 = vadd.f32 %v471, %v638
      %v656 = vadd.f32 %v476, %v643
      %s657 = scalar_lea.vmem %s223, 88
      %v658 = vld [vmem:[%s657] sm:$0xf]
      %v659 = vld [vmem:[%s657 + $0x4] sm:$0xf]
      %v660 = vld [vmem:[%s657 + $0x8] sm:$0xf]
      %v661 = vld [vmem:[%s657 + $0xc] sm:$0xf]
      %v662 = vld [vmem:[%s657 + $0x10] sm:$0xf]
      %v663 = vld [vmem:[%s657 + $0x14] sm:$0xf]
      %v664 = vld [vmem:[%s657 + $0x18] sm:$0xf]
      %v665 = vld [vmem:[%s657 + $0x1c] sm:$0xf]
      %v666 = vld [vmem:[%s657 + $0x20] sm:$0xf]
      %s667 = scalar_lea.vmem %s1, 12
      %v668 = vld [vmem:[%s667] sm:$0xf]
      %v678 = vunpack.c.l.b16 %v658
      %v679 = vunpack.c.l.b16 %v659
      %v680 = vunpack.c.l.b16 %v660
      %v681 = vunpack.c.l.b16 %v661
      %v682 = vunpack.c.l.b16 %v662
      %v683 = vunpack.c.l.b16 %v663
      %v684 = vunpack.c.l.b16 %v664
      %v685 = vunpack.c.l.b16 %v665
      %v686 = vunpack.c.l.b16 %v666
      %v687 = vpack.c.b16 %v679, %v678
      %v688 = vpack.c.b16 %v681, %v680
      %v689 = vpack.c.b16 %v683, %v682
      %v690 = vpack.c.b16 %v685, %v684
      %v691 = vpack.c.b16 %v686, %v686
      %v693 = vsel %vm276, %v687, 0
      %v696 = vsel %vm276, %v688, 0
      %v699 = vsel %vm276, %v689, 0
      %v702 = vsel %vm276, %v690, 0
      %v705 = vsel %vm276, %v691, 0
      %v708 = vsel %vm292, %v668, 0
      %710 = vmatprep.subr.bf16.mxu0 0
      %711 = vmatpush1.bf16.msra.mxu0 0
      %712 = vmatprep.subr.bf16.mxu0 0
      %713 = vmatpush1.bf16.msra.mxu0 0
      %714 = vmatprep.subr.bf16.mxu0 0
      %715 = vmatpush1.bf16.msra.mxu0 0
      %716 = vmatprep.subr.bf16.mxu0 0
      %717 = vmatpush1.bf16.msra.mxu0 0
      %718 = vmatprep.subr.bf16.mxu0 0
      %719 = vmatpush1.bf16.msra.mxu0 0
      %720 = vmatprep.subr.bf16.mxu0 0
      %721 = vmatpush1.bf16.msra.mxu0 0
      %722 = vmatprep.subr.bf16.mxu0 0
      %723 = vmatpush1.bf16.msra.mxu0 0
      %724 = vmatprep.subr.bf16.mxu0 0
      %725 = vmatpush1.bf16.msra.mxu0 %v708
      %726 = vmatprep.subr.bf16.mxu0 0
      %727 = vmatpush2.bf16.msra.mxu0 0
      %728 = vmatprep.subr.bf16.mxu0 0
      %729 = vmatpush2.bf16.msra.mxu0 0
      %730 = vmatprep.subr.bf16.mxu0 0
      %731 = vmatpush2.bf16.msra.mxu0 0
      %732 = vmatprep.subr.bf16.mxu0 0
      %733 = vmatpush2.bf16.msra.mxu0 0
      %734 = vmatprep.subr.bf16.mxu0 0
      %735 = vmatpush2.bf16.msra.mxu0 0
      %736 = vmatprep.subr.bf16.mxu0 0
      %737 = vmatpush2.bf16.msra.mxu0 0
      %738 = vmatprep.subr.bf16.mxu0 0
      %739 = vmatpush2.bf16.msra.mxu0 0
      %740 = vmatprep.subr.bf16.mxu0 0
      %741 = vmatpush2.bf16.msra.mxu0 0
      %742 = vmatprep.mubr.bf16.mxu0 0
      %743 = vmatmul.mubr.bf16.gmra.mxu0 %v693
      %v744 = vpop.f32.mrf.mxu0
      %v745 = vadd.f32 0.0, %v744
      %v746 = vpop.f32.mrf.mxu0
      %v747 = vpop.f32.mrf.mxu0
      %v748 = vadd.f32 0.0, %v747
      %v749 = vpop.f32.mrf.mxu0
      %750 = vmatprep.mubr.bf16.mxu0 0
      %751 = vmatmul.mubr.bf16.gmra.mxu0 %v696
      %v752 = vpop.f32.mrf.mxu0
      %v753 = vadd.f32 0.0, %v752
      %v754 = vpop.f32.mrf.mxu0
      %v755 = vpop.f32.mrf.mxu0
      %v756 = vadd.f32 0.0, %v755
      %v757 = vpop.f32.mrf.mxu0
      %758 = vmatprep.mubr.bf16.mxu0 0
      %759 = vmatmul.mubr.bf16.gmra.mxu0 %v699
      %v760 = vpop.f32.mrf.mxu0
      %v761 = vadd.f32 0.0, %v760
      %v762 = vpop.f32.mrf.mxu0
      %v763 = vpop.f32.mrf.mxu0
      %v764 = vadd.f32 0.0, %v763
      %v765 = vpop.f32.mrf.mxu0
      %766 = vmatprep.mubr.bf16.mxu0 0
      %767 = vmatmul.mubr.bf16.gmra.mxu0 %v702
      %v768 = vpop.f32.mrf.mxu0
      %v769 = vadd.f32 0.0, %v768
      %v770 = vpop.f32.mrf.mxu0
      %v771 = vpop.f32.mrf.mxu0
      %v772 = vadd.f32 0.0, %v771
      %v773 = vpop.f32.mrf.mxu0
      %774 = vmatprep.mubr.bf16.mxu0 0
      %775 = vmatmul.mubr.bf16.gmra.mxu0 %v705
      %v776 = vpop.f32.mrf.mxu0
      %v777 = vadd.f32 0.0, %v776
      %v778 = vpop.f32.mrf.mxu0
      %v779 = vpop.f32.mrf.mxu0
      %v780 = vpop.f32.mrf.mxu0
      %781 = vdwg.mxu0
      %v782 = vadd.f32 %v648, %v745
      %v783 = vadd.f32 %v649, %v748
      %v784 = vadd.f32 %v650, %v753
      %v785 = vadd.f32 %v651, %v756
      %v786 = vadd.f32 %v652, %v761
      %v787 = vadd.f32 %v653, %v764
      %v788 = vadd.f32 %v654, %v769
      %v789 = vadd.f32 %v655, %v772
      %v790 = vadd.f32 %v656, %v777
      %s791 = scalar_lea.vmem %s223, 132
      %v792 = vld [vmem:[%s791] sm:$0xf]
      %v793 = vld [vmem:[%s791 + $0x4] sm:$0xf]
      %v794 = vld [vmem:[%s791 + $0x8] sm:$0xf]
      %v795 = vld [vmem:[%s791 + $0xc] sm:$0xf]
      %v796 = vld [vmem:[%s791 + $0x10] sm:$0xf]
      %v797 = vld [vmem:[%s791 + $0x14] sm:$0xf]
      %v798 = vld [vmem:[%s791 + $0x18] sm:$0xf]
      %v799 = vld [vmem:[%s791 + $0x1c] sm:$0xf]
      %v800 = vld [vmem:[%s791 + $0x20] sm:$0xf]
      %s801 = scalar_lea.vmem %s1, 16
      %v802 = vld [vmem:[%s801] sm:$0xf]
      %v812 = vunpack.c.l.b16 %v792
      %v813 = vunpack.c.l.b16 %v793
      %v814 = vunpack.c.l.b16 %v794
      %v815 = vunpack.c.l.b16 %v795
      %v816 = vunpack.c.l.b16 %v796
      %v817 = vunpack.c.l.b16 %v797
      %v818 = vunpack.c.l.b16 %v798
      %v819 = vunpack.c.l.b16 %v799
      %v820 = vunpack.c.l.b16 %v800
      %v821 = vpack.c.b16 %v813, %v812
      %v822 = vpack.c.b16 %v815, %v814
      %v823 = vpack.c.b16 %v817, %v816
      %v824 = vpack.c.b16 %v819, %v818
      %v825 = vpack.c.b16 %v820, %v820
      %v827 = vsel %vm276, %v821, 0
      %v830 = vsel %vm276, %v822, 0
      %v833 = vsel %vm276, %v823, 0
      %v836 = vsel %vm276, %v824, 0
      %v839 = vsel %vm276, %v825, 0
      %v842 = vsel %vm292, %v802, 0
      %844 = vmatprep.subr.bf16.mxu0 0
      %845 = vmatpush1.bf16.msra.mxu0 0
      %846 = vmatprep.subr.bf16.mxu0 0
      %847 = vmatpush1.bf16.msra.mxu0 0
      %848 = vmatprep.subr.bf16.mxu0 0
      %849 = vmatpush1.bf16.msra.mxu0 0
      %850 = vmatprep.subr.bf16.mxu0 0
      %851 = vmatpush1.bf16.msra.mxu0 0
      %852 = vmatprep.subr.bf16.mxu0 0
      %853 = vmatpush1.bf16.msra.mxu0 0
      %854 = vmatprep.subr.bf16.mxu0 0
      %855 = vmatpush1.bf16.msra.mxu0 0
      %856 = vmatprep.subr.bf16.mxu0 0
      %857 = vmatpush1.bf16.msra.mxu0 0
      %858 = vmatprep.subr.bf16.mxu0 0
      %859 = vmatpush1.bf16.msra.mxu0 %v842
      %860 = vmatprep.subr.bf16.mxu0 0
      %861 = vmatpush2.bf16.msra.mxu0 0
      %862 = vmatprep.subr.bf16.mxu0 0
      %863 = vmatpush2.bf16.msra.mxu0 0
      %864 = vmatprep.subr.bf16.mxu0 0
      %865 = vmatpush2.bf16.msra.mxu0 0
      %866 = vmatprep.subr.bf16.mxu0 0
      %867 = vmatpush2.bf16.msra.mxu0 0
      %868 = vmatprep.subr.bf16.mxu0 0
      %869 = vmatpush2.bf16.msra.mxu0 0
      %870 = vmatprep.subr.bf16.mxu0 0
      %871 = vmatpush2.bf16.msra.mxu0 0
      %872 = vmatprep.subr.bf16.mxu0 0
      %873 = vmatpush2.bf16.msra.mxu0 0
      %874 = vmatprep.subr.bf16.mxu0 0
      %875 = vmatpush2.bf16.msra.mxu0 0
      %876 = vmatprep.mubr.bf16.mxu0 0
      %877 = vmatmul.mubr.bf16.gmra.mxu0 %v827
      %v878 = vpop.f32.mrf.mxu0
      %v879 = vadd.f32 0.0, %v878
      %v880 = vpop.f32.mrf.mxu0
      %v881 = vpop.f32.mrf.mxu0
      %v882 = vadd.f32 0.0, %v881
      %v883 = vpop.f32.mrf.mxu0
      %884 = vmatprep.mubr.bf16.mxu0 0
      %885 = vmatmul.mubr.bf16.gmra.mxu0 %v830
      %v886 = vpop.f32.mrf.mxu0
      %v887 = vadd.f32 0.0, %v886
      %v888 = vpop.f32.mrf.mxu0
      %v889 = vpop.f32.mrf.mxu0
      %v890 = vadd.f32 0.0, %v889
      %v891 = vpop.f32.mrf.mxu0
      %892 = vmatprep.mubr.bf16.mxu0 0
      %893 = vmatmul.mubr.bf16.gmra.mxu0 %v833
      %v894 = vpop.f32.mrf.mxu0
      %v895 = vadd.f32 0.0, %v894
      %v896 = vpop.f32.mrf.mxu0
      %v897 = vpop.f32.mrf.mxu0
      %v898 = vadd.f32 0.0, %v897
      %v899 = vpop.f32.mrf.mxu0
      %900 = vmatprep.mubr.bf16.mxu0 0
      %901 = vmatmul.mubr.bf16.gmra.mxu0 %v836
      %v902 = vpop.f32.mrf.mxu0
      %v903 = vadd.f32 0.0, %v902
      %v904 = vpop.f32.mrf.mxu0
      %v905 = vpop.f32.mrf.mxu0
      %v906 = vadd.f32 0.0, %v905
      %v907 = vpop.f32.mrf.mxu0
      %908 = vmatprep.mubr.bf16.mxu0 0
      %909 = vmatmul.mubr.bf16.gmra.mxu0 %v839
      %v910 = vpop.f32.mrf.mxu0
      %v911 = vadd.f32 0.0, %v910
      %v912 = vpop.f32.mrf.mxu0
      %v913 = vpop.f32.mrf.mxu0
      %v914 = vpop.f32.mrf.mxu0
      %915 = vdwg.mxu0
      %v916 = vadd.f32 %v782, %v879
      %v917 = vadd.f32 %v783, %v882
      %v918 = vadd.f32 %v784, %v887
      %v919 = vadd.f32 %v785, %v890
      %v920 = vadd.f32 %v786, %v895
      %v921 = vadd.f32 %v787, %v898
      %v922 = vadd.f32 %v788, %v903
      %v923 = vadd.f32 %v789, %v906
      %v924 = vadd.f32 %v790, %v911
      %v925 = vld [vmem:[%s657] sm:$0xf]
      %v926 = vld [vmem:[%s657 + $0x4] sm:$0xf]
      %v927 = vld [vmem:[%s657 + $0x8] sm:$0xf]
      %v928 = vld [vmem:[%s657 + $0xc] sm:$0xf]
      %v929 = vld [vmem:[%s657 + $0x10] sm:$0xf]
      %v930 = vld [vmem:[%s657 + $0x14] sm:$0xf]
      %v931 = vld [vmem:[%s657 + $0x18] sm:$0xf]
      %v932 = vld [vmem:[%s657 + $0x1c] sm:$0xf]
      %v933 = vld [vmem:[%s657 + $0x20] sm:$0xf]
      %v934 = vld [vmem:[%s657 + $0x24] sm:$0x1]
      %s935 = scalar_lea.vmem %s1, 20
      %v936 = vld [vmem:[%s935] sm:$0xf]
      %v947 = vunpack.c.l.b16 %v925
      %v948 = vunpack.c.l.b16 %v926
      %v949 = vunpack.c.l.b16 %v927
      %v950 = vunpack.c.l.b16 %v928
      %v951 = vunpack.c.l.b16 %v929
      %v952 = vunpack.c.l.b16 %v930
      %v953 = vunpack.c.l.b16 %v931
      %v954 = vunpack.c.l.b16 %v932
      %v955 = vunpack.c.l.b16 %v933
      %v956 = vunpack.c.l.b16 %v934
      %v957 = vpack.c.b16 %v948, %v947
      %v958 = vpack.c.b16 %v950, %v949
      %v959 = vpack.c.b16 %v952, %v951
      %v960 = vpack.c.b16 %v954, %v953
      %v961 = vpack.c.b16 %v956, %v955
      %v963 = vshrl.u32 %v957, 16
      %v965 = vshll.u32 %v957, 16
      %v967 = vrot.slane %v965, 1
      %v968 = vor.u32 %v963, %v967
      %v970 = vshll.u32 %v958, 16
      %v972 = vrot.slane %v970, 1
      %v973 = vsel %vm518, %v968, %v972
      %v974 = vshrl.u32 %v958, 16
      %v976 = vor.u32 %v974, %v972
      %v978 = vshll.u32 %v959, 16
      %v980 = vrot.slane %v978, 1
      %v981 = vsel %vm518, %v976, %v980
      %v982 = vshrl.u32 %v959, 16
      %v984 = vor.u32 %v982, %v980
      %v986 = vshll.u32 %v960, 16
      %v988 = vrot.slane %v986, 1
      %v989 = vsel %vm518, %v984, %v988
      %v990 = vshrl.u32 %v960, 16
      %v992 = vor.u32 %v990, %v988
      %v994 = vshll.u32 %v961, 16
      %v996 = vrot.slane %v994, 1
      %v997 = vsel %vm518, %v992, %v996
      %v998 = vshrl.u32 %v961, 16
      %v1000 = vor.u32 %v998, %v996
      %v1002 = vsel %vm276, %v973, 0
      %v1005 = vsel %vm276, %v981, 0
      %v1008 = vsel %vm276, %v989, 0
      %v1011 = vsel %vm276, %v997, 0
      %v1014 = vsel %vm276, %v1000, 0
      %v1017 = vsel %vm292, %v936, 0
      %1019 = vmatprep.subr.bf16.mxu0 0
      %1020 = vmatpush1.bf16.msra.mxu0 0
      %1021 = vmatprep.subr.bf16.mxu0 0
      %1022 = vmatpush1.bf16.msra.mxu0 0
      %1023 = vmatprep.subr.bf16.mxu0 0
      %1024 = vmatpush1.bf16.msra.mxu0 0
      %1025 = vmatprep.subr.bf16.mxu0 0
      %1026 = vmatpush1.bf16.msra.mxu0 0
      %1027 = vmatprep.subr.bf16.mxu0 0
      %1028 = vmatpush1.bf16.msra.mxu0 0
      %1029 = vmatprep.subr.bf16.mxu0 0
      %1030 = vmatpush1.bf16.msra.mxu0 0
      %1031 = vmatprep.subr.bf16.mxu0 0
      %1032 = vmatpush1.bf16.msra.mxu0 0
      %1033 = vmatprep.subr.bf16.mxu0 0
      %1034 = vmatpush1.bf16.msra.mxu0 %v1017
      %1035 = vmatprep.subr.bf16.mxu0 0
      %1036 = vmatpush2.bf16.msra.mxu0 0
      %1037 = vmatprep.subr.bf16.mxu0 0
      %1038 = vmatpush2.bf16.msra.mxu0 0
      %1039 = vmatprep.subr.bf16.mxu0 0
      %1040 = vmatpush2.bf16.msra.mxu0 0
      %1041 = vmatprep.subr.bf16.mxu0 0
      %1042 = vmatpush2.bf16.msra.mxu0 0
      %1043 = vmatprep.subr.bf16.mxu0 0
      %1044 = vmatpush2.bf16.msra.mxu0 0
      %1045 = vmatprep.subr.bf16.mxu0 0
      %1046 = vmatpush2.bf16.msra.mxu0 0
      %1047 = vmatprep.subr.bf16.mxu0 0
      %1048 = vmatpush2.bf16.msra.mxu0 0
      %1049 = vmatprep.subr.bf16.mxu0 0
      %1050 = vmatpush2.bf16.msra.mxu0 0
      %1051 = vmatprep.mubr.bf16.mxu0 0
      %1052 = vmatmul.mubr.bf16.gmra.mxu0 %v1002
      %v1053 = vpop.f32.mrf.mxu0
      %v1054 = vadd.f32 0.0, %v1053
      %v1055 = vpop.f32.mrf.mxu0
      %v1056 = vpop.f32.mrf.mxu0
      %v1057 = vadd.f32 0.0, %v1056
      %v1058 = vpop.f32.mrf.mxu0
      %1059 = vmatprep.mubr.bf16.mxu0 0
      %1060 = vmatmul.mubr.bf16.gmra.mxu0 %v1005
      %v1061 = vpop.f32.mrf.mxu0
      %v1062 = vadd.f32 0.0, %v1061
      %v1063 = vpop.f32.mrf.mxu0
      %v1064 = vpop.f32.mrf.mxu0
      %v1065 = vadd.f32 0.0, %v1064
      %v1066 = vpop.f32.mrf.mxu0
      %1067 = vmatprep.mubr.bf16.mxu0 0
      %1068 = vmatmul.mubr.bf16.gmra.mxu0 %v1008
      %v1069 = vpop.f32.mrf.mxu0
      %v1070 = vadd.f32 0.0, %v1069
      %v1071 = vpop.f32.mrf.mxu0
      %v1072 = vpop.f32.mrf.mxu0
      %v1073 = vadd.f32 0.0, %v1072
      %v1074 = vpop.f32.mrf.mxu0
      %1075 = vmatprep.mubr.bf16.mxu0 0
      %1076 = vmatmul.mubr.bf16.gmra.mxu0 %v1011
      %v1077 = vpop.f32.mrf.mxu0
      %v1078 = vadd.f32 0.0, %v1077
      %v1079 = vpop.f32.mrf.mxu0
      %v1080 = vpop.f32.mrf.mxu0
      %v1081 = vadd.f32 0.0, %v1080
      %v1082 = vpop.f32.mrf.mxu0
      %1083 = vmatprep.mubr.bf16.mxu0 0
      %1084 = vmatmul.mubr.bf16.gmra.mxu0 %v1014
      %v1085 = vpop.f32.mrf.mxu0
      %v1086 = vadd.f32 0.0, %v1085
      %v1087 = vpop.f32.mrf.mxu0
      %v1088 = vpop.f32.mrf.mxu0
      %v1089 = vpop.f32.mrf.mxu0
      %1090 = vdwg.mxu0
      %v1091 = vadd.f32 %v916, %v1054
      %v1092 = vadd.f32 %v917, %v1057
      %v1093 = vadd.f32 %v918, %v1062
      %v1094 = vadd.f32 %v919, %v1065
      %v1095 = vadd.f32 %v920, %v1070
      %v1096 = vadd.f32 %v921, %v1073
      %v1097 = vadd.f32 %v922, %v1078
      %v1098 = vadd.f32 %v923, %v1081
      %v1099 = vadd.f32 %v924, %v1086
      %v1100 = vld [vmem:[%s223 + $0x4] sm:$0xf]
      %v1101 = vld [vmem:[%s223 + $0x8] sm:$0xf]
      %v1102 = vld [vmem:[%s223 + $0xc] sm:$0xf]
      %v1103 = vld [vmem:[%s223 + $0x10] sm:$0xf]
      %v1104 = vld [vmem:[%s223 + $0x14] sm:$0xf]
      %v1105 = vld [vmem:[%s223 + $0x18] sm:$0xf]
      %v1106 = vld [vmem:[%s223 + $0x1c] sm:$0xf]
      %v1107 = vld [vmem:[%s223 + $0x20] sm:$0xf]
      %v1108 = vld [vmem:[%s223 + $0x24] sm:$0xf]
      %v1109 = vld [vmem:[%s223 + $0x28] sm:$0x1]
      %s1110 = scalar_lea.vmem %s1, 24
      %v1111 = vld [vmem:[%s1110] sm:$0xf]
      %v1122 = vunpack.c.l.b16 %v1100
      %v1123 = vunpack.c.l.b16 %v1101
      %v1124 = vunpack.c.l.b16 %v1102
      %v1125 = vunpack.c.l.b16 %v1103
      %v1126 = vunpack.c.l.b16 %v1104
      %v1127 = vunpack.c.l.b16 %v1105
      %v1128 = vunpack.c.l.b16 %v1106
      %v1129 = vunpack.c.l.b16 %v1107
      %v1130 = vunpack.c.l.b16 %v1108
      %v1131 = vunpack.c.l.b16 %v1109
      %v1132 = vpack.c.b16 %v1123, %v1122
      %v1133 = vpack.c.b16 %v1125, %v1124
      %v1134 = vpack.c.b16 %v1127, %v1126
      %v1135 = vpack.c.b16 %v1129, %v1128
      %v1136 = vpack.c.b16 %v1131, %v1130
      %v1138 = vshrl.u32 %v1132, 16
      %v1140 = vshll.u32 %v1132, 16
      %v1142 = vrot.slane %v1140, 1
      %v1143 = vor.u32 %v1138, %v1142
      %v1145 = vshll.u32 %v1133, 16
      %v1147 = vrot.slane %v1145, 1
      %v1148 = vsel %vm518, %v1143, %v1147
      %v1149 = vshrl.u32 %v1133, 16
      %v1151 = vor.u32 %v1149, %v1147
      %v1153 = vshll.u32 %v1134, 16
      %v1155 = vrot.slane %v1153, 1
      %v1156 = vsel %vm518, %v1151, %v1155
      %v1157 = vshrl.u32 %v1134, 16
      %v1159 = vor.u32 %v1157, %v1155
      %v1161 = vshll.u32 %v1135, 16
      %v1163 = vrot.slane %v1161, 1
      %v1164 = vsel %vm518, %v1159, %v1163
      %v1165 = vshrl.u32 %v1135, 16
      %v1167 = vor.u32 %v1165, %v1163
      %v1169 = vshll.u32 %v1136, 16
      %v1171 = vrot.slane %v1169, 1
      %v1172 = vsel %vm518, %v1167, %v1171
      %v1173 = vshrl.u32 %v1136, 16
      %v1175 = vor.u32 %v1173, %v1171
      %v1177 = vsel %vm276, %v1148, 0
      %v1180 = vsel %vm276, %v1156, 0
      %v1183 = vsel %vm276, %v1164, 0
      %v1186 = vsel %vm276, %v1172, 0
      %v1189 = vsel %vm276, %v1175, 0
      %v1192 = vsel %vm292, %v1111, 0
      %1194 = vmatprep.subr.bf16.mxu0 0
      %1195 = vmatpush1.bf16.msra.mxu0 0
      %1196 = vmatprep.subr.bf16.mxu0 0
      %1197 = vmatpush1.bf16.msra.mxu0 0
      %1198 = vmatprep.subr.bf16.mxu0 0
      %1199 = vmatpush1.bf16.msra.mxu0 0
      %1200 = vmatprep.subr.bf16.mxu0 0
      %1201 = vmatpush1.bf16.msra.mxu0 0
      %1202 = vmatprep.subr.bf16.mxu0 0
      %1203 = vmatpush1.bf16.msra.mxu0 0
      %1204 = vmatprep.subr.bf16.mxu0 0
      %1205 = vmatpush1.bf16.msra.mxu0 0
      %1206 = vmatprep.subr.bf16.mxu0 0
      %1207 = vmatpush1.bf16.msra.mxu0 0
      %1208 = vmatprep.subr.bf16.mxu0 0
      %1209 = vmatpush1.bf16.msra.mxu0 %v1192
      %1210 = vmatprep.subr.bf16.mxu0 0
      %1211 = vmatpush2.bf16.msra.mxu0 0
      %1212 = vmatprep.subr.bf16.mxu0 0
      %1213 = vmatpush2.bf16.msra.mxu0 0
      %1214 = vmatprep.subr.bf16.mxu0 0
      %1215 = vmatpush2.bf16.msra.mxu0 0
      %1216 = vmatprep.subr.bf16.mxu0 0
      %1217 = vmatpush2.bf16.msra.mxu0 0
      %1218 = vmatprep.subr.bf16.mxu0 0
      %1219 = vmatpush2.bf16.msra.mxu0 0
      %1220 = vmatprep.subr.bf16.mxu0 0
      %1221 = vmatpush2.bf16.msra.mxu0 0
      %1222 = vmatprep.subr.bf16.mxu0 0
      %1223 = vmatpush2.bf16.msra.mxu0 0
      %1224 = vmatprep.subr.bf16.mxu0 0
      %1225 = vmatpush2.bf16.msra.mxu0 0
      %1226 = vmatprep.mubr.bf16.mxu0 0
      %1227 = vmatmul.mubr.bf16.gmra.mxu0 %v1177
      %v1228 = vpop.f32.mrf.mxu0
      %v1229 = vadd.f32 0.0, %v1228
      %v1230 = vpop.f32.mrf.mxu0
      %v1231 = vpop.f32.mrf.mxu0
      %v1232 = vadd.f32 0.0, %v1231
      %v1233 = vpop.f32.mrf.mxu0
      %1234 = vmatprep.mubr.bf16.mxu0 0
      %1235 = vmatmul.mubr.bf16.gmra.mxu0 %v1180
      %v1236 = vpop.f32.mrf.mxu0
      %v1237 = vadd.f32 0.0, %v1236
      %v1238 = vpop.f32.mrf.mxu0
      %v1239 = vpop.f32.mrf.mxu0
      %v1240 = vadd.f32 0.0, %v1239
      %v1241 = vpop.f32.mrf.mxu0
      %1242 = vmatprep.mubr.bf16.mxu0 0
      %1243 = vmatmul.mubr.bf16.gmra.mxu0 %v1183
      %v1244 = vpop.f32.mrf.mxu0
      %v1245 = vadd.f32 0.0, %v1244
      %v1246 = vpop.f32.mrf.mxu0
      %v1247 = vpop.f32.mrf.mxu0
      %v1248 = vadd.f32 0.0, %v1247
      %v1249 = vpop.f32.mrf.mxu0
      %1250 = vmatprep.mubr.bf16.mxu0 0
      %1251 = vmatmul.mubr.bf16.gmra.mxu0 %v1186
      %v1252 = vpop.f32.mrf.mxu0
      %v1253 = vadd.f32 0.0, %v1252
      %v1254 = vpop.f32.mrf.mxu0
      %v1255 = vpop.f32.mrf.mxu0
      %v1256 = vadd.f32 0.0, %v1255
      %v1257 = vpop.f32.mrf.mxu0
      %1258 = vmatprep.mubr.bf16.mxu0 0
      %1259 = vmatmul.mubr.bf16.gmra.mxu0 %v1189
      %v1260 = vpop.f32.mrf.mxu0
      %v1261 = vadd.f32 0.0, %v1260
      %v1262 = vpop.f32.mrf.mxu0
      %v1263 = vpop.f32.mrf.mxu0
      %v1264 = vpop.f32.mrf.mxu0
      %1265 = vdwg.mxu0
      %v1266 = vadd.f32 %v1091, %v1229
      %v1267 = vadd.f32 %v1092, %v1232
      %v1268 = vadd.f32 %v1093, %v1237
      %v1269 = vadd.f32 %v1094, %v1240
      %v1270 = vadd.f32 %v1095, %v1245
      %v1271 = vadd.f32 %v1096, %v1248
      %v1272 = vadd.f32 %v1097, %v1253
      %v1273 = vadd.f32 %v1098, %v1256
      %v1274 = vadd.f32 %v1099, %v1261
      %v1275 = vld [vmem:[%s241 + $0x4] sm:$0xf]
      %v1276 = vld [vmem:[%s241 + $0x8] sm:$0xf]
      %v1277 = vld [vmem:[%s241 + $0xc] sm:$0xf]
      %v1278 = vld [vmem:[%s241 + $0x10] sm:$0xf]
      %v1279 = vld [vmem:[%s241 + $0x14] sm:$0xf]
      %v1280 = vld [vmem:[%s241 + $0x18] sm:$0xf]
      %v1281 = vld [vmem:[%s241 + $0x1c] sm:$0xf]
      %v1282 = vld [vmem:[%s241 + $0x20] sm:$0xf]
      %v1283 = vld [vmem:[%s241 + $0x24] sm:$0xf]
      %v1284 = vld [vmem:[%s241 + $0x28] sm:$0x1]
      %s1285 = scalar_lea.vmem %s1, 28
      %v1286 = vld [vmem:[%s1285] sm:$0xf]
      %v1297 = vunpack.c.l.b16 %v1275
      %v1298 = vunpack.c.l.b16 %v1276
      %v1299 = vunpack.c.l.b16 %v1277
      %v1300 = vunpack.c.l.b16 %v1278
      %v1301 = vunpack.c.l.b16 %v1279
      %v1302 = vunpack.c.l.b16 %v1280
      %v1303 = vunpack.c.l.b16 %v1281
      %v1304 = vunpack.c.l.b16 %v1282
      %v1305 = vunpack.c.l.b16 %v1283
      %v1306 = vunpack.c.l.b16 %v1284
      %v1307 = vpack.c.b16 %v1298, %v1297
      %v1308 = vpack.c.b16 %v1300, %v1299
      %v1309 = vpack.c.b16 %v1302, %v1301
      %v1310 = vpack.c.b16 %v1304, %v1303
      %v1311 = vpack.c.b16 %v1306, %v1305
      %v1313 = vshrl.u32 %v1307, 16
      %v1315 = vshll.u32 %v1307, 16
      %v1317 = vrot.slane %v1315, 1
      %v1318 = vor.u32 %v1313, %v1317
      %v1320 = vshll.u32 %v1308, 16
      %v1322 = vrot.slane %v1320, 1
      %v1323 = vsel %vm518, %v1318, %v1322
      %v1324 = vshrl.u32 %v1308, 16
      %v1326 = vor.u32 %v1324, %v1322
      %v1328 = vshll.u32 %v1309, 16
      %v1330 = vrot.slane %v1328, 1
      %v1331 = vsel %vm518, %v1326, %v1330
      %v1332 = vshrl.u32 %v1309, 16
      %v1334 = vor.u32 %v1332, %v1330
      %v1336 = vshll.u32 %v1310, 16
      %v1338 = vrot.slane %v1336, 1
      %v1339 = vsel %vm518, %v1334, %v1338
      %v1340 = vshrl.u32 %v1310, 16
      %v1342 = vor.u32 %v1340, %v1338
      %v1344 = vshll.u32 %v1311, 16
      %v1346 = vrot.slane %v1344, 1
      %v1347 = vsel %vm518, %v1342, %v1346
      %v1348 = vshrl.u32 %v1311, 16
      %v1350 = vor.u32 %v1348, %v1346
      %v1352 = vsel %vm276, %v1323, 0
      %v1355 = vsel %vm276, %v1331, 0
      %v1358 = vsel %vm276, %v1339, 0
      %v1361 = vsel %vm276, %v1347, 0
      %v1364 = vsel %vm276, %v1350, 0
      %v1367 = vsel %vm292, %v1286, 0
      %1369 = vmatprep.subr.bf16.mxu0 0
      %1370 = vmatpush1.bf16.msra.mxu0 0
      %1371 = vmatprep.subr.bf16.mxu0 0
      %1372 = vmatpush1.bf16.msra.mxu0 0
      %1373 = vmatprep.subr.bf16.mxu0 0
      %1374 = vmatpush1.bf16.msra.mxu0 0
      %1375 = vmatprep.subr.bf16.mxu0 0
      %1376 = vmatpush1.bf16.msra.mxu0 0
      %1377 = vmatprep.subr.bf16.mxu0 0
      %1378 = vmatpush1.bf16.msra.mxu0 0
      %1379 = vmatprep.subr.bf16.mxu0 0
      %1380 = vmatpush1.bf16.msra.mxu0 0
      %1381 = vmatprep.subr.bf16.mxu0 0
      %1382 = vmatpush1.bf16.msra.mxu0 0
      %1383 = vmatprep.subr.bf16.mxu0 0
      %1384 = vmatpush1.bf16.msra.mxu0 %v1367
      %1385 = vmatprep.subr.bf16.mxu0 0
      %1386 = vmatpush2.bf16.msra.mxu0 0
      %1387 = vmatprep.subr.bf16.mxu0 0
      %1388 = vmatpush2.bf16.msra.mxu0 0
      %1389 = vmatprep.subr.bf16.mxu0 0
      %1390 = vmatpush2.bf16.msra.mxu0 0
      %1391 = vmatprep.subr.bf16.mxu0 0
      %1392 = vmatpush2.bf16.msra.mxu0 0
      %1393 = vmatprep.subr.bf16.mxu0 0
      %1394 = vmatpush2.bf16.msra.mxu0 0
      %1395 = vmatprep.subr.bf16.mxu0 0
      %1396 = vmatpush2.bf16.msra.mxu0 0
      %1397 = vmatprep.subr.bf16.mxu0 0
      %1398 = vmatpush2.bf16.msra.mxu0 0
      %1399 = vmatprep.subr.bf16.mxu0 0
      %1400 = vmatpush2.bf16.msra.mxu0 0
      %1401 = vmatprep.mubr.bf16.mxu0 0
      %1402 = vmatmul.mubr.bf16.gmra.mxu0 %v1352
      %v1403 = vpop.f32.mrf.mxu0
      %v1404 = vadd.f32 0.0, %v1403
      %v1405 = vpop.f32.mrf.mxu0
      %v1406 = vpop.f32.mrf.mxu0
      %v1407 = vadd.f32 0.0, %v1406
      %v1408 = vpop.f32.mrf.mxu0
      %1409 = vmatprep.mubr.bf16.mxu0 0
      %1410 = vmatmul.mubr.bf16.gmra.mxu0 %v1355
      %v1411 = vpop.f32.mrf.mxu0
      %v1412 = vadd.f32 0.0, %v1411
      %v1413 = vpop.f32.mrf.mxu0
      %v1414 = vpop.f32.mrf.mxu0
      %v1415 = vadd.f32 0.0, %v1414
      %v1416 = vpop.f32.mrf.mxu0
      %1417 = vmatprep.mubr.bf16.mxu0 0
      %1418 = vmatmul.mubr.bf16.gmra.mxu0 %v1358
      %v1419 = vpop.f32.mrf.mxu0
      %v1420 = vadd.f32 0.0, %v1419
      %v1421 = vpop.f32.mrf.mxu0
      %v1422 = vpop.f32.mrf.mxu0
      %v1423 = vadd.f32 0.0, %v1422
      %v1424 = vpop.f32.mrf.mxu0
      %1425 = vmatprep.mubr.bf16.mxu0 0
      %1426 = vmatmul.mubr.bf16.gmra.mxu0 %v1361
      %v1427 = vpop.f32.mrf.mxu0
      %v1428 = vadd.f32 0.0, %v1427
      %v1429 = vpop.f32.mrf.mxu0
      %v1430 = vpop.f32.mrf.mxu0
      %v1431 = vadd.f32 0.0, %v1430
      %v1432 = vpop.f32.mrf.mxu0
      %1433 = vmatprep.mubr.bf16.mxu0 0
      %1434 = vmatmul.mubr.bf16.gmra.mxu0 %v1364
      %v1435 = vpop.f32.mrf.mxu0
      %v1436 = vadd.f32 0.0, %v1435
      %v1437 = vpop.f32.mrf.mxu0
      %v1438 = vpop.f32.mrf.mxu0
      %v1439 = vpop.f32.mrf.mxu0
      %1440 = vdwg.mxu0
      %v1441 = vadd.f32 %v1266, %v1404
      %v1442 = vadd.f32 %v1267, %v1407
      %v1443 = vadd.f32 %v1268, %v1412
      %v1444 = vadd.f32 %v1269, %v1415
      %v1445 = vadd.f32 %v1270, %v1420
      %v1446 = vadd.f32 %v1271, %v1423
      %v1447 = vadd.f32 %v1272, %v1428
      %v1448 = vadd.f32 %v1273, %v1431
      %v1449 = vadd.f32 %v1274, %v1436
      %v1450 = vld [vmem:[%s223 + $0x4] sm:$0xe]
      %s1451 = scalar_lea.vmem %s1, 32
      %v1452 = vld [vmem:[%s1451] sm:$0xf]
      %v1454 = vunpack.c.l.b16 %v1450
      %v1455 = vpack.c.b16 %v1123, %v1454
      %vm1456 = vcmask 1046528
      %v1457 = vrot.slane %v1455, 1
      %v1458 = vrot.slane %v1133, 1
      %v1459 = vsel %vm1456, %v1457, %v1458
      %v1460 = vrot.slane %v1134, 1
      %v1461 = vsel %vm1456, %v1458, %v1460
      %v1462 = vrot.slane %v1135, 1
      %v1463 = vsel %vm1456, %v1460, %v1462
      %v1464 = vrot.slane %v1136, 1
      %v1465 = vsel %vm1456, %v1462, %v1464
      %v1467 = vsel %vm276, %v1459, 0
      %v1470 = vsel %vm276, %v1461, 0
      %v1473 = vsel %vm276, %v1463, 0
      %v1476 = vsel %vm276, %v1465, 0
      %v1479 = vsel %vm276, %v1464, 0
      %v1482 = vsel %vm292, %v1452, 0
      %1484 = vmatprep.subr.bf16.mxu0 0
      %1485 = vmatpush1.bf16.msra.mxu0 0
      %1486 = vmatprep.subr.bf16.mxu0 0
      %1487 = vmatpush1.bf16.msra.mxu0 0
      %1488 = vmatprep.subr.bf16.mxu0 0
      %1489 = vmatpush1.bf16.msra.mxu0 0
      %1490 = vmatprep.subr.bf16.mxu0 0
      %1491 = vmatpush1.bf16.msra.mxu0 0
      %1492 = vmatprep.subr.bf16.mxu0 0
      %1493 = vmatpush1.bf16.msra.mxu0 0
      %1494 = vmatprep.subr.bf16.mxu0 0
      %1495 = vmatpush1.bf16.msra.mxu0 0
      %1496 = vmatprep.subr.bf16.mxu0 0
      %1497 = vmatpush1.bf16.msra.mxu0 0
      %1498 = vmatprep.subr.bf16.mxu0 0
      %1499 = vmatpush1.bf16.msra.mxu0 %v1482
      %1500 = vmatprep.subr.bf16.mxu0 0
      %1501 = vmatpush2.bf16.msra.mxu0 0
      %1502 = vmatprep.subr.bf16.mxu0 0
      %1503 = vmatpush2.bf16.msra.mxu0 0
      %1504 = vmatprep.subr.bf16.mxu0 0
      %1505 = vmatpush2.bf16.msra.mxu0 0
      %1506 = vmatprep.subr.bf16.mxu0 0
      %1507 = vmatpush2.bf16.msra.mxu0 0
      %1508 = vmatprep.subr.bf16.mxu0 0
      %1509 = vmatpush2.bf16.msra.mxu0 0
      %1510 = vmatprep.subr.bf16.mxu0 0
      %1511 = vmatpush2.bf16.msra.mxu0 0
      %1512 = vmatprep.subr.bf16.mxu0 0
      %1513 = vmatpush2.bf16.msra.mxu0 0
      %1514 = vmatprep.subr.bf16.mxu0 0
      %1515 = vmatpush2.bf16.msra.mxu0 0
      %1516 = vmatprep.mubr.bf16.mxu0 0
      %1517 = vmatmul.mubr.bf16.gmra.mxu0 %v1467
      %v1518 = vpop.f32.mrf.mxu0
      %v1519 = vadd.f32 0.0, %v1518
      %v1520 = vpop.f32.mrf.mxu0
      %v1521 = vpop.f32.mrf.mxu0
      %v1522 = vadd.f32 0.0, %v1521
      %v1523 = vpop.f32.mrf.mxu0
      %1524 = vmatprep.mubr.bf16.mxu0 0
      %1525 = vmatmul.mubr.bf16.gmra.mxu0 %v1470
      %v1526 = vpop.f32.mrf.mxu0
      %v1527 = vadd.f32 0.0, %v1526
      %v1528 = vpop.f32.mrf.mxu0
      %v1529 = vpop.f32.mrf.mxu0
      %v1530 = vadd.f32 0.0, %v1529
      %v1531 = vpop.f32.mrf.mxu0
      %1532 = vmatprep.mubr.bf16.mxu0 0
      %1533 = vmatmul.mubr.bf16.gmra.mxu0 %v1473
      %v1534 = vpop.f32.mrf.mxu0
      %v1535 = vadd.f32 0.0, %v1534
      %v1536 = vpop.f32.mrf.mxu0
      %v1537 = vpop.f32.mrf.mxu0
      %v1538 = vadd.f32 0.0, %v1537
      %v1539 = vpop.f32.mrf.mxu0
      %1540 = vmatprep.mubr.bf16.mxu0 0
      %1541 = vmatmul.mubr.bf16.gmra.mxu0 %v1476
      %v1542 = vpop.f32.mrf.mxu0
      %v1543 = vadd.f32 0.0, %v1542
      %v1544 = vpop.f32.mrf.mxu0
      %v1545 = vpop.f32.mrf.mxu0
      %v1546 = vadd.f32 0.0, %v1545
      %v1547 = vpop.f32.mrf.mxu0
      %1548 = vmatprep.mubr.bf16.mxu0 0
      %1549 = vmatmul.mubr.bf16.gmra.mxu0 %v1479
      %v1550 = vpop.f32.mrf.mxu0
      %v1551 = vadd.f32 0.0, %v1550
      %v1552 = vpop.f32.mrf.mxu0
      %v1553 = vpop.f32.mrf.mxu0
      %v1554 = vpop.f32.mrf.mxu0
      %1555 = vdwg.mxu0
      %v1556 = vadd.f32 %v1441, %v1519
      %v1557 = vadd.f32 %v1442, %v1522
      %v1558 = vadd.f32 %v1443, %v1527
      %v1559 = vadd.f32 %v1444, %v1530
      %v1560 = vadd.f32 %v1445, %v1535
      %v1561 = vadd.f32 %v1446, %v1538
      %v1562 = vadd.f32 %v1447, %v1543
      %v1563 = vadd.f32 %v1448, %v1546
      %v1564 = vadd.f32 %v1449, %v1551
      %v1565 = vld [vmem:[%s2] sm:$0x1]
      %v1567 = vlaneseq
      %v1568 = vshrl.u32 %v1567, 7
      %v1569 = vsub.s32 0, %v1568
      %v1570 = vrot.slane %v1565, %v1569
      %v1572 = vadd.f32 %v1556, %v1570
      %v1573 = vadd.f32 %v1557, %v1570
      %v1574 = vadd.f32 %v1558, %v1570
      %v1575 = vadd.f32 %v1559, %v1570
      %v1576 = vadd.f32 %v1560, %v1570
      %v1577 = vadd.f32 %v1561, %v1570
      %v1578 = vadd.f32 %v1562, %v1570
      %v1579 = vadd.f32 %v1563, %v1570
      %v1580 = vadd.f32 %v1564, %v1570
      %v1581 = vsel %vm276, %v1572, 0.0
      %1582 = vadd.xlane.f32.xlu0 %v1581
      %v1583 = vpop.xlane.xlu0 %1582
      %v1584 = vsel %vm276, %v1573, 0.0
      %1585 = vadd.xlane.f32.xlu0 %v1584
      %v1586 = vpop.xlane.xlu0 %1585
      %v1587 = vsel %vm276, %v1574, 0.0
      %1588 = vadd.xlane.f32.xlu0 %v1587
      %v1589 = vpop.xlane.xlu0 %1588
      %v1590 = vsel %vm276, %v1575, 0.0
      %1591 = vadd.xlane.f32.xlu0 %v1590
      %v1592 = vpop.xlane.xlu0 %1591
      %v1593 = vsel %vm276, %v1576, 0.0
      %1594 = vadd.xlane.f32.xlu0 %v1593
      %v1595 = vpop.xlane.xlu0 %1594
      %v1596 = vsel %vm276, %v1577, 0.0
      %1597 = vadd.xlane.f32.xlu0 %v1596
      %v1598 = vpop.xlane.xlu0 %1597
      %v1599 = vsel %vm276, %v1578, 0.0
      %1600 = vadd.xlane.f32.xlu0 %v1599
      %v1601 = vpop.xlane.xlu0 %1600
      %v1602 = vsel %vm276, %v1579, 0.0
      %1603 = vadd.xlane.f32.xlu0 %v1602
      %v1604 = vpop.xlane.xlu0 %1603
      %v1605 = vsel %vm276, %v1580, 0.0
      %1606 = vadd.xlane.f32.xlu0 %v1605
      %v1607 = vpop.xlane.xlu0 %1606
      %v1608 = vrcp.pop 8.0
      %v1609 = vmul.f32 %v1583, %v1608
      %v1610 = vmul.f32 %v1586, %v1608
      %v1611 = vmul.f32 %v1589, %v1608
      %v1612 = vmul.f32 %v1592, %v1608
      %v1613 = vmul.f32 %v1595, %v1608
      %v1614 = vmul.f32 %v1598, %v1608
      %v1615 = vmul.f32 %v1601, %v1608
      %v1616 = vmul.f32 %v1604, %v1608
      %v1617 = vmul.f32 %v1607, %v1608
      %v1618 = vsub.f32 %v1572, %v1609
      %v1619 = vsub.f32 %v1573, %v1610
      %v1620 = vsub.f32 %v1574, %v1611
      %v1621 = vsub.f32 %v1575, %v1612
      %v1622 = vsub.f32 %v1576, %v1613
      %v1623 = vsub.f32 %v1577, %v1614
      %v1624 = vsub.f32 %v1578, %v1615
      %v1625 = vsub.f32 %v1579, %v1616
      %v1626 = vsub.f32 %v1580, %v1617
      %v1627 = vmul.f32 %v1618, %v1618
      %v1628 = vmul.f32 %v1619, %v1619
      %v1629 = vmul.f32 %v1620, %v1620
      %v1630 = vmul.f32 %v1621, %v1621
      %v1631 = vmul.f32 %v1622, %v1622
      %v1632 = vmul.f32 %v1623, %v1623
      %v1633 = vmul.f32 %v1624, %v1624
      %v1634 = vmul.f32 %v1625, %v1625
      %v1635 = vmul.f32 %v1626, %v1626
      %v1636 = vsel %vm276, %v1627, 0.0
      %1637 = vadd.xlane.f32.xlu0 %v1636
      %v1638 = vpop.xlane.xlu0 %1637
      %v1639 = vsel %vm276, %v1628, 0.0
      %1640 = vadd.xlane.f32.xlu0 %v1639
      %v1641 = vpop.xlane.xlu0 %1640
      %v1642 = vsel %vm276, %v1629, 0.0
      %1643 = vadd.xlane.f32.xlu0 %v1642
      %v1644 = vpop.xlane.xlu0 %1643
      %v1645 = vsel %vm276, %v1630, 0.0
      %1646 = vadd.xlane.f32.xlu0 %v1645
      %v1647 = vpop.xlane.xlu0 %1646
      %v1648 = vsel %vm276, %v1631, 0.0
      %1649 = vadd.xlane.f32.xlu0 %v1648
      %v1650 = vpop.xlane.xlu0 %1649
      %v1651 = vsel %vm276, %v1632, 0.0
      %1652 = vadd.xlane.f32.xlu0 %v1651
      %v1653 = vpop.xlane.xlu0 %1652
      %v1654 = vsel %vm276, %v1633, 0.0
      %1655 = vadd.xlane.f32.xlu0 %v1654
      %v1656 = vpop.xlane.xlu0 %1655
      %v1657 = vsel %vm276, %v1634, 0.0
      %1658 = vadd.xlane.f32.xlu0 %v1657
      %v1659 = vpop.xlane.xlu0 %1658
      %v1660 = vsel %vm276, %v1635, 0.0
      %1661 = vadd.xlane.f32.xlu0 %v1660
      %v1662 = vpop.xlane.xlu0 %1661
      %v1663 = vmul.f32 %v1638, %v1608
      %v1664 = vmul.f32 %v1641, %v1608
      %v1665 = vmul.f32 %v1644, %v1608
      %v1666 = vmul.f32 %v1647, %v1608
      %v1667 = vmul.f32 %v1650, %v1608
      %v1668 = vmul.f32 %v1653, %v1608
      %v1669 = vmul.f32 %v1656, %v1608
      %v1670 = vmul.f32 %v1659, %v1608
      %v1671 = vmul.f32 %v1662, %v1608
      %v1672 = vadd.f32 %v1663, 1e-05
      %v1673 = vadd.f32 %v1664, 1e-05
      %v1674 = vadd.f32 %v1665, 1e-05
      %v1675 = vadd.f32 %v1666, 1e-05
      %v1676 = vadd.f32 %v1667, 1e-05
      %v1677 = vadd.f32 %v1668, 1e-05
      %v1678 = vadd.f32 %v1669, 1e-05
      %v1679 = vadd.f32 %v1670, 1e-05
      %v1680 = vadd.f32 %v1671, 1e-05
      %v1681 = vrsqrt.pop %v1672
      %v1682 = vrsqrt.pop %v1673
      %v1683 = vrsqrt.pop %v1674
      %v1684 = vrsqrt.pop %v1675
      %v1685 = vrsqrt.pop %v1676
      %v1686 = vrsqrt.pop %v1677
      %v1687 = vrsqrt.pop %v1678
      %v1688 = vrsqrt.pop %v1679
      %v1689 = vrsqrt.pop %v1680
      %v1690 = vmul.f32 %v1618, %v1681
      %v1691 = vmul.f32 %v1619, %v1682
      %v1692 = vmul.f32 %v1620, %v1683
      %v1693 = vmul.f32 %v1621, %v1684
      %v1694 = vmul.f32 %v1622, %v1685
      %v1695 = vmul.f32 %v1623, %v1686
      %v1696 = vmul.f32 %v1624, %v1687
      %v1697 = vmul.f32 %v1625, %v1688
      %v1698 = vmul.f32 %v1626, %v1689
      %v1699 = vld [vmem:[%s3] sm:$0x1]
      %v1701 = vlaneseq
      %v1702 = vshrl.u32 %v1701, 7
      %v1703 = vsub.s32 0, %v1702
      %v1704 = vrot.slane %v1699, %v1703
      %v1706 = vmul.f32 %v1690, %v1704
      %v1707 = vmul.f32 %v1691, %v1704
      %v1708 = vmul.f32 %v1692, %v1704
      %v1709 = vmul.f32 %v1693, %v1704
      %v1710 = vmul.f32 %v1694, %v1704
      %v1711 = vmul.f32 %v1695, %v1704
      %v1712 = vmul.f32 %v1696, %v1704
      %v1713 = vmul.f32 %v1697, %v1704
      %v1714 = vmul.f32 %v1698, %v1704
      %v1715 = vld [vmem:[%s4] sm:$0x1]
      %v1717 = vlaneseq
      %v1718 = vshrl.u32 %v1717, 7
      %v1719 = vsub.s32 0, %v1718
      %v1720 = vrot.slane %v1715, %v1719
      %v1722 = vadd.f32 %v1706, %v1720
      %v1723 = vadd.f32 %v1707, %v1720
      %v1724 = vadd.f32 %v1708, %v1720
      %v1725 = vadd.f32 %v1709, %v1720
      %v1726 = vadd.f32 %v1710, %v1720
      %v1727 = vadd.f32 %v1711, %v1720
      %v1728 = vadd.f32 %v1712, %v1720
      %v1729 = vadd.f32 %v1713, %v1720
      %v1730 = vadd.f32 %v1714, %v1720
      %1731 = vst.msk [vmem:[%s229] sm:$0xff] %vm276, %v1722
      %s1732 = scalar_lea.vmem %s229, 8
      %vm1733 = vcmask 64513
      %1734 = vst.msk [vmem:[%s1732 - $0x1] sm:$0xfe] %vm1733, %v1723
      %vm1735 = vcmask 57344
      %1736 = vst.msk [vmem:[%s1732 + $0x7] sm:$0x1] %vm1735, %v1724
      %s1737 = scalar_lea.vmem %s229, 16
      %vm1738 = vcmask 64514
      %1739 = vst.msk [vmem:[%s1737 - $0x2] sm:$0xfc] %vm1738, %v1724
      %vm1740 = vcmask 58368
      %1741 = vst.msk [vmem:[%s1737 + $0x6] sm:$0x3] %vm1740, %v1725
      %s1742 = scalar_lea.vmem %s229, 24
      %vm1743 = vcmask 64515
      %1744 = vst.msk [vmem:[%s1742 - $0x3] sm:$0xf8] %vm1743, %v1725
      %vm1745 = vcmask 59392
      %1746 = vst.msk [vmem:[%s1742 + $0x5] sm:$0x7] %vm1745, %v1726
      %s1747 = scalar_lea.vmem %s229, 32
      %vm1748 = vcmask 64516
      %1749 = vst.msk [vmem:[%s1747 - $0x4] sm:$0xf0] %vm1748, %v1726
      %vm1750 = vcmask 60416
      %1751 = vst.msk [vmem:[%s1747 + $0x4] sm:$0xf] %vm1750, %v1727
      %s1752 = scalar_lea.vmem %s229, 40
      %vm1753 = vcmask 64517
      %1754 = vst.msk [vmem:[%s1752 - $0x5] sm:$0xe0] %vm1753, %v1727
      %vm1755 = vcmask 61440
      %1756 = vst.msk [vmem:[%s1752 + $0x3] sm:$0x1f] %vm1755, %v1728
      %s1757 = scalar_lea.vmem %s229, 48
      %vm1758 = vcmask 64518
      %1759 = vst.msk [vmem:[%s1757 - $0x6] sm:$0xc0] %vm1758, %v1728
      %vm1760 = vcmask 62464
      %1761 = vst.msk [vmem:[%s1757 + $0x2] sm:$0x3f] %vm1760, %v1729
      %s1762 = scalar_lea.vmem %s229, 56
      %vm1763 = vcmask 64519
      %1764 = vst.msk [vmem:[%s1762 - $0x7] sm:$0x80] %vm1763, %v1729
      %vm1765 = vcmask 63488
      %1766 = vst.msk [vmem:[%s1762 + $0x1] sm:$0x7f] %vm1765, %v1730
      %p1767 = scmp.lt.s32.totalorder %s16, 1
      %s1768 = scalar_select %p1767, %s16, 1
      %s1769 = smul.addr %s1768, 8
      %s1770 = smul.addr %s1769, 8
      %s1771 = scalar_lea.vmem %s5, %s1770
      // Predicated region
      $region41: #{_merge_block_impl.1} parent=39 // pred_check
        %p1772 = pneg %p144
      $region42: #{_merge_block_impl.1} parent=39 // pred_check_branch
        %1774 = sbr.rel (%p1772) target = $region44
      $region43: #{_merge_block_impl.1} parent=39 // pred_region
        _
      $region44: #{_merge_block_impl.1} parent=39 // pred_fallthru
        _
    $region40: #{_merge_block_impl.1} parent=5 // pred_fallthru
      _
    %p1775 = scmp.le.s32.totalorder 2, %s11
    // Predicated region
    $region45: #{_merge_block_impl.1} parent=5 // pred_check
      %p1776 = pneg %p1775
    $region46: #{_merge_block_impl.1} parent=5 // pred_check_branch
      %1778 = sbr.rel (%p1776) target = $region48
    $region47: #{_merge_block_impl.1} parent=5 // pred_region
      %s1779 = ssub.s32 %s11, 2
      // Predicated region
      $region49: #{_merge_block_impl.1} parent=47 // pred_check
        %p1780 = pneg %p150
      $region50: #{_merge_block_impl.1} parent=47 // pred_check_branch
        %1782 = sbr.rel (%p1780) target = $region52
      $region51: #{_merge_block_impl.1} parent=47 // pred_region
        %p1783 = scmp.lt.s32.totalorder %s17, 1
        %s1784 = scalar_select %p1783, %s17, 1
        %s1785 = smul.addr %s1784, 8
        %s1786 = smul.addr %s1785, 8
        %s1787 = scalar_lea.vmem %s5, %s1786
      $region52: #{_merge_block_impl.1} parent=47 // pred_fallthru
        _
    $region48: #{_merge_block_impl.1} parent=5 // pred_fallthru
      _
  $region6: #{_merge_block_impl.1} parent=0 // loop_footer
    %s15 = sadd.s32 1, %s11
  $region7: #{_merge_block_impl.1} parent=0 // loop_footer_branch
    %10 = sbr.rel target = $region3
  $region8: #{_merge_block_impl.1} parent=0 // loop_exit
    _

</llo_original>
